<compile_context>
chip_gen: v6e
topology: v6e:2x2x1
jax: 0.10.0
libtpu: 0.0.40
codegen_flags: <defaults>
</compile_context>

<pallas_src>
import functools

import jax
import jax.numpy as jnp
from jax import lax
from jax.experimental import pallas as pl
from jax.experimental.pallas import tpu as pltpu


def _round_up(x: int, m: int) -> int:
    return (x + m - 1) // m * m


# ---------------------------------------------------------------------------
# Embedding lookup kernel:  out[i, :] = weight[ids[i], :]
#   One grid step gathers `t_block` rows via manual row DMAs (all in flight),
#   then writes a dense (t_block, dims) tile.
# ---------------------------------------------------------------------------
def _gather_kernel(ids_ref, w_hbm, o_ref, buf, sems, *, t_block, words):
    i = pl.program_id(0)
    base = i * t_block

    def issue(t, carry):
        tok = ids_ref[base + t]
        # Clamp out-of-range ids so the data-dependent DMA can never walk off
        # the embedding table.
        tok = jnp.minimum(jnp.maximum(tok, 0), words - 1)
        pltpu.make_async_copy(
            w_hbm.at[pl.ds(tok, 1), :], buf.at[pl.ds(t, 1), :], sems.at[t]
        ).start()
        return carry

    # Launch all row DMAs for this block before waiting -> many DMAs in flight.
    lax.fori_loop(0, t_block, issue, 0, unroll=True)

    def wait(t, carry):
        pltpu.make_async_copy(
            w_hbm.at[pl.ds(0, 1), :], buf.at[pl.ds(t, 1), :], sems.at[t]
        ).wait()
        return carry

    lax.fori_loop(0, t_block, wait, 0, unroll=True)

    o_ref[...] = buf[...]


def embedding_lookup(ids_flat: jax.Array, weight: jax.Array,
                     *, token_block: int = 128) -> jax.Array:
    """ids_flat: (n_tokens,) int32; weight: (words, dims) -> (n_tokens, dims)."""
    n_tokens = ids_flat.shape[0]
    words, dims = weight.shape

    # Tokens per grid step: multiple of 8 (sublane-dense output tiles),
    # capped at `token_block`.
    t_block = min(token_block, _round_up(max(n_tokens, 1), 8))
    n_pad = _round_up(n_tokens, t_block)
    ids_p = jnp.pad(ids_flat.astype(jnp.int32), (0, n_pad - n_tokens))
    num_blocks = n_pad // t_block

    kernel = functools.partial(_gather_kernel, t_block=t_block, words=words)

    grid_spec = pltpu.PrefetchScalarGridSpec(
        num_scalar_prefetch=1,
        grid=(num_blocks,),
        in_specs=[pl.BlockSpec(memory_space=pl.ANY)],   # weight stays in HBM
        out_specs=pl.BlockSpec((t_block, dims), lambda i, ids: (i, 0)),
        scratch_shapes=[
            pltpu.VMEM((t_block, dims), weight.dtype),
            pltpu.SemaphoreType.DMA((t_block,)),
        ],
    )

    out = pl.pallas_call(
        kernel,
        out_shape=jax.ShapeDtypeStruct((n_pad, dims), weight.dtype),
        grid_spec=grid_spec,
        compiler_params=pltpu.CompilerParams(
            dimension_semantics=("parallel",)),
    )(ids_p, weight)
    return out[:n_tokens]


# ---------------------------------------------------------------------------
# Transposed path kernel:  out = x @ weight.T   (tiled, f32 accumulator)
# ---------------------------------------------------------------------------
def _matmul_t_kernel(x_ref, w_ref, o_ref, acc_ref, *, mxu_dtype):
    @pl.when(pl.program_id(2) == 0)
    def _():
        acc_ref[...] = jnp.zeros_like(acc_ref)

    x = x_ref[...].astype(mxu_dtype)
    w = w_ref[...].astype(mxu_dtype)
    # Contract the last dim of both operands: feeds the MXU directly,
    # no in-kernel transpose of the weight tile.
    acc_ref[...] += lax.dot_general(
        x, w,
        dimension_numbers=(((1,), (1,)), ((), ())),
        preferred_element_type=jnp.float32,
    )

    @pl.when(pl.program_id(2) == pl.num_programs(2) - 1)
    def _():
        o_ref[...] = acc_ref[...].astype(o_ref.dtype)


def logits_matmul(x_flat: jax.Array, weight: jax.Array,
                  *, tm: int = 256, tn: int = 512, tk: int = 512,
                  mxu_dtype=jnp.float32) -> jax.Array:
    """x_flat: (n_tokens, dims); weight: (words, dims) -> (n_tokens, words).

    Pads vocab / dims to multiples of 128 (unmasked lane-dense stores, aligned
    tiles) and tiles M/N/K so the kernel scales to GPT-2 vocab sizes without
    exceeding VMEM (tiles fit comfortably under v7x's 64 MiB budget).
    Pass mxu_dtype=jnp.bfloat16 for ~2-4x MXU throughput on v6e/v7x when
    bf16 logits precision is acceptable (accumulation stays f32).
    """
    n_tokens, dims = x_flat.shape
    words, _ = weight.shape

    M = _round_up(max(n_tokens, 1), 8)
    K = _round_up(dims, 128)
    N = _round_up(words, 128)
    tm = min(tm, M)
    tk = min(tk, K)
    tn = min(tn, N)
    M = _round_up(M, tm)
    K = _round_up(K, tk)
    N = _round_up(N, tn)

    x_p = jnp.pad(x_flat, ((0, M - n_tokens), (0, K - dims)))
    w_p = jnp.pad(weight, ((0, N - words), (0, K - dims)))

    kernel = functools.partial(_matmul_t_kernel, mxu_dtype=mxu_dtype)
    grid = (M // tm, N // tn, K // tk)

    out = pl.pallas_call(
        kernel,
        out_shape=jax.ShapeDtypeStruct((M, N), jnp.float32),
        grid_spec=pltpu.PrefetchScalarGridSpec(
            num_scalar_prefetch=0,
            grid=grid,
            in_specs=[
                pl.BlockSpec((tm, tk), lambda i, j, k: (i, k)),
                pl.BlockSpec((tn, tk), lambda i, j, k: (j, k)),
            ],
            out_specs=pl.BlockSpec((tm, tn), lambda i, j, k: (i, j)),
            scratch_shapes=[pltpu.VMEM((tm, tn), jnp.float32)],
        ),
        compiler_params=pltpu.CompilerParams(
            dimension_semantics=("parallel", "parallel", "arbitrary")),
    )(x_p, w_p)
    return out[:n_tokens, :words]


# ---------------------------------------------------------------------------
# Module-equivalent wrapper
# ---------------------------------------------------------------------------
def token_embedding_forward(x: jax.Array, weight: jax.Array,
                            transposed: bool = False) -> jax.Array:
    words, dims = weight.shape
    if transposed:
        lead = x.shape[:-1]          # (..., seq_len)
        x_flat = x.reshape(-1, dims).astype(weight.dtype)
        out = logits_matmul(x_flat, weight)
        return out.reshape(*lead, words)
    else:
        lead = x.shape               # (..., seq_len)
        ids_flat = x.reshape(-1).astype(jnp.int32)
        out = embedding_lookup(ids_flat, weight)
        return out.reshape(*lead, dims)


if __name__ == "__main__":
    words, dims = 64, 32
    batch, seq = 2, 8

    key = jax.random.PRNGKey(0)
    k_w, k_ids, k_x = jax.random.split(key, 3)

    # nn.Embedding weight, reset_parameters: normal(std=0.02)
    weight = (0.02 * jax.random.normal(k_w, (words, dims))).astype(jnp.float32)

    # ---- lookup path: x is integer token ids (batch, seq) ----
    ids = jax.random.randint(k_ids, (batch, seq), 0, words, dtype=jnp.int32)
    emb_out = token_embedding_forward(ids, weight, transposed=False)
    emb_out = jax.block_until_ready(emb_out)
    ref_emb = jnp.take(weight, ids, axis=0)
    assert emb_out.shape == (batch, seq, dims)
    assert jnp.allclose(emb_out, ref_emb, atol=1e-6), "lookup mismatch"

    # ---- transposed path: x is (batch, seq, dims) float ----
    x_float = jax.random.normal(k_x, (batch, seq, dims), dtype=jnp.float32)
    logits = token_embedding_forward(x_float, weight, transposed=True)
    logits = jax.block_until_ready(logits)
    ref_logits = jnp.matmul(x_float, weight.T)
    assert logits.shape == (batch, seq, words)
    assert jnp.allclose(logits, ref_logits, atol=1e-4), "matmul mismatch"

    print("KERNEL_OK")
</pallas_src>

<mosaic_0001>
module attributes {stable_mosaic.version = 11 : i64} {
  func.func @_gather_kernel(%arg0: i32, %arg1: memref<16xi32, #tpu.memory_space<smem>>, %arg2: memref<64x32xf32, #tpu.memory_space<any>>, %arg3: memref<16x32xf32, #tpu.memory_space<vmem>>, %arg4: memref<16x32xf32, #tpu.memory_space<vmem>>, %arg5: memref<16x!tpu.dma_semaphore, #tpu.memory_space<semaphore_mem>>) attributes {dimension_semantics = [#tpu.dimension_semantics<parallel>], iteration_bounds = array<i64: 1>, scalar_prefetch = 1 : i64, scratch_operands = 2 : i64, tpu.core_type = #tpu.core_type<tc>, window_params = [{}, {transform_indices = @transform_1, window_bounds = array<i64: 16, 32>}]} {
    %c16_i32 = arith.constant 16 : i32
    %0 = arith.muli %arg0, %c16_i32 : i32
    %c0_i32 = arith.constant 0 : i32
    %1 = arith.addi %0, %c0_i32 : i32
    %2 = arith.index_cast %1 : i32 to index
    %3 = memref.load %arg1[%2] : memref<16xi32, #tpu.memory_space<smem>>
    %c0_i32_0 = arith.constant 0 : i32
    %4 = arith.maxsi %3, %c0_i32_0 : i32
    %c63_i32 = arith.constant 63 : i32
    %5 = arith.minsi %4, %c63_i32 : i32
    %c0_i32_1 = arith.constant 0 : i32
    %6 = tpu.memref_slice %arg2[%5, %c0_i32_1] : memref<64x32xf32, #tpu.memory_space<any>> -> memref<1x32xf32, #tpu.memory_space<any>>
    %c0_i32_2 = arith.constant 0 : i32
    %7 = tpu.memref_slice %arg4[%c0_i32, %c0_i32_2] : memref<16x32xf32, #tpu.memory_space<vmem>> -> memref<1x32xf32, #tpu.memory_space<vmem>>
    %8 = tpu.memref_slice %arg5[%c0_i32] : memref<16x!tpu.dma_semaphore, #tpu.memory_space<semaphore_mem>> -> memref<1x!tpu.dma_semaphore, #tpu.memory_space<semaphore_mem>>
    %9 = tpu.memref_squeeze %8 : memref<1x!tpu.dma_semaphore, #tpu.memory_space<semaphore_mem>> -> memref<!tpu.dma_semaphore, #tpu.memory_space<semaphore_mem>>
    tpu.enqueue_dma source(%6 : memref<1x32xf32, #tpu.memory_space<any>>) target(%7 : memref<1x32xf32, #tpu.memory_space<vmem>>) target_semaphore(%9 : memref<!tpu.dma_semaphore, #tpu.memory_space<semaphore_mem>>)
    %c1_i32 = arith.constant 1 : i32
    %10 = arith.addi %0, %c1_i32 : i32
    %11 = arith.index_cast %10 : i32 to index
    %12 = memref.load %arg1[%11] : memref<16xi32, #tpu.memory_space<smem>>
    %c0_i32_3 = arith.constant 0 : i32
    %13 = arith.maxsi %12, %c0_i32_3 : i32
    %c63_i32_4 = arith.constant 63 : i32
    %14 = arith.minsi %13, %c63_i32_4 : i32
    %c0_i32_5 = arith.constant 0 : i32
    %15 = tpu.memref_slice %arg2[%14, %c0_i32_5] : memref<64x32xf32, #tpu.memory_space<any>> -> memref<1x32xf32, #tpu.memory_space<any>>
    %c0_i32_6 = arith.constant 0 : i32
    %16 = tpu.memref_slice %arg4[%c1_i32, %c0_i32_6] : memref<16x32xf32, #tpu.memory_space<vmem>> -> memref<1x32xf32, #tpu.memory_space<vmem>>
    %17 = tpu.memref_slice %arg5[%c1_i32] : memref<16x!tpu.dma_semaphore, #tpu.memory_space<semaphore_mem>> -> memref<1x!tpu.dma_semaphore, #tpu.memory_space<semaphore_mem>>
    %18 = tpu.memref_squeeze %17 : memref<1x!tpu.dma_semaphore, #tpu.memory_space<semaphore_mem>> -> memref<!tpu.dma_semaphore, #tpu.memory_space<semaphore_mem>>
    tpu.enqueue_dma source(%15 : memref<1x32xf32, #tpu.memory_space<any>>) target(%16 : memref<1x32xf32, #tpu.memory_space<vmem>>) target_semaphore(%18 : memref<!tpu.dma_semaphore, #tpu.memory_space<semaphore_mem>>)
    %c2_i32 = arith.constant 2 : i32
    %19 = arith.addi %0, %c2_i32 : i32
    %20 = arith.index_cast %19 : i32 to index
    %21 = memref.load %arg1[%20] : memref<16xi32, #tpu.memory_space<smem>>
    %c0_i32_7 = arith.constant 0 : i32
    %22 = arith.maxsi %21, %c0_i32_7 : i32
    %c63_i32_8 = arith.constant 63 : i32
    %23 = arith.minsi %22, %c63_i32_8 : i32
    %c0_i32_9 = arith.constant 0 : i32
    %24 = tpu.memref_slice %arg2[%23, %c0_i32_9] : memref<64x32xf32, #tpu.memory_space<any>> -> memref<1x32xf32, #tpu.memory_space<any>>
    %c0_i32_10 = arith.constant 0 : i32
    %25 = tpu.memref_slice %arg4[%c2_i32, %c0_i32_10] : memref<16x32xf32, #tpu.memory_space<vmem>> -> memref<1x32xf32, #tpu.memory_space<vmem>>
    %26 = tpu.memref_slice %arg5[%c2_i32] : memref<16x!tpu.dma_semaphore, #tpu.memory_space<semaphore_mem>> -> memref<1x!tpu.dma_semaphore, #tpu.memory_space<semaphore_mem>>
    %27 = tpu.memref_squeeze %26 : memref<1x!tpu.dma_semaphore, #tpu.memory_space<semaphore_mem>> -> memref<!tpu.dma_semaphore, #tpu.memory_space<semaphore_mem>>
    tpu.enqueue_dma source(%24 : memref<1x32xf32, #tpu.memory_space<any>>) target(%25 : memref<1x32xf32, #tpu.memory_space<vmem>>) target_semaphore(%27 : memref<!tpu.dma_semaphore, #tpu.memory_space<semaphore_mem>>)
    %c3_i32 = arith.constant 3 : i32
    %28 = arith.addi %0, %c3_i32 : i32
    %29 = arith.index_cast %28 : i32 to index
    %30 = memref.load %arg1[%29] : memref<16xi32, #tpu.memory_space<smem>>
    %c0_i32_11 = arith.constant 0 : i32
    %31 = arith.maxsi %30, %c0_i32_11 : i32
    %c63_i32_12 = arith.constant 63 : i32
    %32 = arith.minsi %31, %c63_i32_12 : i32
    %c0_i32_13 = arith.constant 0 : i32
    %33 = tpu.memref_slice %arg2[%32, %c0_i32_13] : memref<64x32xf32, #tpu.memory_space<any>> -> memref<1x32xf32, #tpu.memory_space<any>>
    %c0_i32_14 = arith.constant 0 : i32
    %34 = tpu.memref_slice %arg4[%c3_i32, %c0_i32_14] : memref<16x32xf32, #tpu.memory_space<vmem>> -> memref<1x32xf32, #tpu.memory_space<vmem>>
    %35 = tpu.memref_slice %arg5[%c3_i32] : memref<16x!tpu.dma_semaphore, #tpu.memory_space<semaphore_mem>> -> memref<1x!tpu.dma_semaphore, #tpu.memory_space<semaphore_mem>>
    %36 = tpu.memref_squeeze %35 : memref<1x!tpu.dma_semaphore, #tpu.memory_space<semaphore_mem>> -> memref<!tpu.dma_semaphore, #tpu.memory_space<semaphore_mem>>
    tpu.enqueue_dma source(%33 : memref<1x32xf32, #tpu.memory_space<any>>) target(%34 : memref<1x32xf32, #tpu.memory_space<vmem>>) target_semaphore(%36 : memref<!tpu.dma_semaphore, #tpu.memory_space<semaphore_mem>>)
    %c4_i32 = arith.constant 4 : i32
    %37 = arith.addi %0, %c4_i32 : i32
    %38 = arith.index_cast %37 : i32 to index
    %39 = memref.load %arg1[%38] : memref<16xi32, #tpu.memory_space<smem>>
    %c0_i32_15 = arith.constant 0 : i32
    %40 = arith.maxsi %39, %c0_i32_15 : i32
    %c63_i32_16 = arith.constant 63 : i32
    %41 = arith.minsi %40, %c63_i32_16 : i32
    %c0_i32_17 = arith.constant 0 : i32
    %42 = tpu.memref_slice %arg2[%41, %c0_i32_17] : memref<64x32xf32, #tpu.memory_space<any>> -> memref<1x32xf32, #tpu.memory_space<any>>
    %c0_i32_18 = arith.constant 0 : i32
    %43 = tpu.memref_slice %arg4[%c4_i32, %c0_i32_18] : memref<16x32xf32, #tpu.memory_space<vmem>> -> memref<1x32xf32, #tpu.memory_space<vmem>>
    %44 = tpu.memref_slice %arg5[%c4_i32] : memref<16x!tpu.dma_semaphore, #tpu.memory_space<semaphore_mem>> -> memref<1x!tpu.dma_semaphore, #tpu.memory_space<semaphore_mem>>
    %45 = tpu.memref_squeeze %44 : memref<1x!tpu.dma_semaphore, #tpu.memory_space<semaphore_mem>> -> memref<!tpu.dma_semaphore, #tpu.memory_space<semaphore_mem>>
    tpu.enqueue_dma source(%42 : memref<1x32xf32, #tpu.memory_space<any>>) target(%43 : memref<1x32xf32, #tpu.memory_space<vmem>>) target_semaphore(%45 : memref<!tpu.dma_semaphore, #tpu.memory_space<semaphore_mem>>)
    %c5_i32 = arith.constant 5 : i32
    %46 = arith.addi %0, %c5_i32 : i32
    %47 = arith.index_cast %46 : i32 to index
    %48 = memref.load %arg1[%47] : memref<16xi32, #tpu.memory_space<smem>>
    %c0_i32_19 = arith.constant 0 : i32
    %49 = arith.maxsi %48, %c0_i32_19 : i32
    %c63_i32_20 = arith.constant 63 : i32
    %50 = arith.minsi %49, %c63_i32_20 : i32
    %c0_i32_21 = arith.constant 0 : i32
    %51 = tpu.memref_slice %arg2[%50, %c0_i32_21] : memref<64x32xf32, #tpu.memory_space<any>> -> memref<1x32xf32, #tpu.memory_space<any>>
    %c0_i32_22 = arith.constant 0 : i32
    %52 = tpu.memref_slice %arg4[%c5_i32, %c0_i32_22] : memref<16x32xf32, #tpu.memory_space<vmem>> -> memref<1x32xf32, #tpu.memory_space<vmem>>
    %53 = tpu.memref_slice %arg5[%c5_i32] : memref<16x!tpu.dma_semaphore, #tpu.memory_space<semaphore_mem>> -> memref<1x!tpu.dma_semaphore, #tpu.memory_space<semaphore_mem>>
    %54 = tpu.memref_squeeze %53 : memref<1x!tpu.dma_semaphore, #tpu.memory_space<semaphore_mem>> -> memref<!tpu.dma_semaphore, #tpu.memory_space<semaphore_mem>>
    tpu.enqueue_dma source(%51 : memref<1x32xf32, #tpu.memory_space<any>>) target(%52 : memref<1x32xf32, #tpu.memory_space<vmem>>) target_semaphore(%54 : memref<!tpu.dma_semaphore, #tpu.memory_space<semaphore_mem>>)
    %c6_i32 = arith.constant 6 : i32
    %55 = arith.addi %0, %c6_i32 : i32
    %56 = arith.index_cast %55 : i32 to index
    %57 = memref.load %arg1[%56] : memref<16xi32, #tpu.memory_space<smem>>
    %c0_i32_23 = arith.constant 0 : i32
    %58 = arith.maxsi %57, %c0_i32_23 : i32
    %c63_i32_24 = arith.constant 63 : i32
    %59 = arith.minsi %58, %c63_i32_24 : i32
    %c0_i32_25 = arith.constant 0 : i32
    %60 = tpu.memref_slice %arg2[%59, %c0_i32_25] : memref<64x32xf32, #tpu.memory_space<any>> -> memref<1x32xf32, #tpu.memory_space<any>>
    %c0_i32_26 = arith.constant 0 : i32
    %61 = tpu.memref_slice %arg4[%c6_i32, %c0_i32_26] : memref<16x32xf32, #tpu.memory_space<vmem>> -> memref<1x32xf32, #tpu.memory_space<vmem>>
    %62 = tpu.memref_slice %arg5[%c6_i32] : memref<16x!tpu.dma_semaphore, #tpu.memory_space<semaphore_mem>> -> memref<1x!tpu.dma_semaphore, #tpu.memory_space<semaphore_mem>>
    %63 = tpu.memref_squeeze %62 : memref<1x!tpu.dma_semaphore, #tpu.memory_space<semaphore_mem>> -> memref<!tpu.dma_semaphore, #tpu.memory_space<semaphore_mem>>
    tpu.enqueue_dma source(%60 : memref<1x32xf32, #tpu.memory_space<any>>) target(%61 : memref<1x32xf32, #tpu.memory_space<vmem>>) target_semaphore(%63 : memref<!tpu.dma_semaphore, #tpu.memory_space<semaphore_mem>>)
    %c7_i32 = arith.constant 7 : i32
    %64 = arith.addi %0, %c7_i32 : i32
    %65 = arith.index_cast %64 : i32 to index
    %66 = memref.load %arg1[%65] : memref<16xi32, #tpu.memory_space<smem>>
    %c0_i32_27 = arith.constant 0 : i32
    %67 = arith.maxsi %66, %c0_i32_27 : i32
    %c63_i32_28 = arith.constant 63 : i32
    %68 = arith.minsi %67, %c63_i32_28 : i32
    %c0_i32_29 = arith.constant 0 : i32
    %69 = tpu.memref_slice %arg2[%68, %c0_i32_29] : memref<64x32xf32, #tpu.memory_space<any>> -> memref<1x32xf32, #tpu.memory_space<any>>
    %c0_i32_30 = arith.constant 0 : i32
    %70 = tpu.memref_slice %arg4[%c7_i32, %c0_i32_30] : memref<16x32xf32, #tpu.memory_space<vmem>> -> memref<1x32xf32, #tpu.memory_space<vmem>>
    %71 = tpu.memref_slice %arg5[%c7_i32] : memref<16x!tpu.dma_semaphore, #tpu.memory_space<semaphore_mem>> -> memref<1x!tpu.dma_semaphore, #tpu.memory_space<semaphore_mem>>
    %72 = tpu.memref_squeeze %71 : memref<1x!tpu.dma_semaphore, #tpu.memory_space<semaphore_mem>> -> memref<!tpu.dma_semaphore, #tpu.memory_space<semaphore_mem>>
    tpu.enqueue_dma source(%69 : memref<1x32xf32, #tpu.memory_space<any>>) target(%70 : memref<1x32xf32, #tpu.memory_space<vmem>>) target_semaphore(%72 : memref<!tpu.dma_semaphore, #tpu.memory_space<semaphore_mem>>)
    %c8_i32 = arith.constant 8 : i32
    %73 = arith.addi %0, %c8_i32 : i32
    %74 = arith.index_cast %73 : i32 to index
    %75 = memref.load %arg1[%74] : memref<16xi32, #tpu.memory_space<smem>>
    %c0_i32_31 = arith.constant 0 : i32
    %76 = arith.maxsi %75, %c0_i32_31 : i32
    %c63_i32_32 = arith.constant 63 : i32
    %77 = arith.minsi %76, %c63_i32_32 : i32
    %c0_i32_33 = arith.constant 0 : i32
    %78 = tpu.memref_slice %arg2[%77, %c0_i32_33] : memref<64x32xf32, #tpu.memory_space<any>> -> memref<1x32xf32, #tpu.memory_space<any>>
    %c0_i32_34 = arith.constant 0 : i32
    %79 = tpu.memref_slice %arg4[%c8_i32, %c0_i32_34] : memref<16x32xf32, #tpu.memory_space<vmem>> -> memref<1x32xf32, #tpu.memory_space<vmem>>
    %80 = tpu.memref_slice %arg5[%c8_i32] : memref<16x!tpu.dma_semaphore, #tpu.memory_space<semaphore_mem>> -> memref<1x!tpu.dma_semaphore, #tpu.memory_space<semaphore_mem>>
    %81 = tpu.memref_squeeze %80 : memref<1x!tpu.dma_semaphore, #tpu.memory_space<semaphore_mem>> -> memref<!tpu.dma_semaphore, #tpu.memory_space<semaphore_mem>>
    tpu.enqueue_dma source(%78 : memref<1x32xf32, #tpu.memory_space<any>>) target(%79 : memref<1x32xf32, #tpu.memory_space<vmem>>) target_semaphore(%81 : memref<!tpu.dma_semaphore, #tpu.memory_space<semaphore_mem>>)
    %c9_i32 = arith.constant 9 : i32
    %82 = arith.addi %0, %c9_i32 : i32
    %83 = arith.index_cast %82 : i32 to index
    %84 = memref.load %arg1[%83] : memref<16xi32, #tpu.memory_space<smem>>
    %c0_i32_35 = arith.constant 0 : i32
    %85 = arith.maxsi %84, %c0_i32_35 : i32
    %c63_i32_36 = arith.constant 63 : i32
    %86 = arith.minsi %85, %c63_i32_36 : i32
    %c0_i32_37 = arith.constant 0 : i32
    %87 = tpu.memref_slice %arg2[%86, %c0_i32_37] : memref<64x32xf32, #tpu.memory_space<any>> -> memref<1x32xf32, #tpu.memory_space<any>>
    %c0_i32_38 = arith.constant 0 : i32
    %88 = tpu.memref_slice %arg4[%c9_i32, %c0_i32_38] : memref<16x32xf32, #tpu.memory_space<vmem>> -> memref<1x32xf32, #tpu.memory_space<vmem>>
    %89 = tpu.memref_slice %arg5[%c9_i32] : memref<16x!tpu.dma_semaphore, #tpu.memory_space<semaphore_mem>> -> memref<1x!tpu.dma_semaphore, #tpu.memory_space<semaphore_mem>>
    %90 = tpu.memref_squeeze %89 : memref<1x!tpu.dma_semaphore, #tpu.memory_space<semaphore_mem>> -> memref<!tpu.dma_semaphore, #tpu.memory_space<semaphore_mem>>
    tpu.enqueue_dma source(%87 : memref<1x32xf32, #tpu.memory_space<any>>) target(%88 : memref<1x32xf32, #tpu.memory_space<vmem>>) target_semaphore(%90 : memref<!tpu.dma_semaphore, #tpu.memory_space<semaphore_mem>>)
    %c10_i32 = arith.constant 10 : i32
    %91 = arith.addi %0, %c10_i32 : i32
    %92 = arith.index_cast %91 : i32 to index
    %93 = memref.load %arg1[%92] : memref<16xi32, #tpu.memory_space<smem>>
    %c0_i32_39 = arith.constant 0 : i32
    %94 = arith.maxsi %93, %c0_i32_39 : i32
    %c63_i32_40 = arith.constant 63 : i32
    %95 = arith.minsi %94, %c63_i32_40 : i32
    %c0_i32_41 = arith.constant 0 : i32
    %96 = tpu.memref_slice %arg2[%95, %c0_i32_41] : memref<64x32xf32, #tpu.memory_space<any>> -> memref<1x32xf32, #tpu.memory_space<any>>
    %c0_i32_42 = arith.constant 0 : i32
    %97 = tpu.memref_slice %arg4[%c10_i32, %c0_i32_42] : memref<16x32xf32, #tpu.memory_space<vmem>> -> memref<1x32xf32, #tpu.memory_space<vmem>>
    %98 = tpu.memref_slice %arg5[%c10_i32] : memref<16x!tpu.dma_semaphore, #tpu.memory_space<semaphore_mem>> -> memref<1x!tpu.dma_semaphore, #tpu.memory_space<semaphore_mem>>
    %99 = tpu.memref_squeeze %98 : memref<1x!tpu.dma_semaphore, #tpu.memory_space<semaphore_mem>> -> memref<!tpu.dma_semaphore, #tpu.memory_space<semaphore_mem>>
    tpu.enqueue_dma source(%96 : memref<1x32xf32, #tpu.memory_space<any>>) target(%97 : memref<1x32xf32, #tpu.memory_space<vmem>>) target_semaphore(%99 : memref<!tpu.dma_semaphore, #tpu.memory_space<semaphore_mem>>)
    %c11_i32 = arith.constant 11 : i32
    %100 = arith.addi %0, %c11_i32 : i32
    %101 = arith.index_cast %100 : i32 to index
    %102 = memref.load %arg1[%101] : memref<16xi32, #tpu.memory_space<smem>>
    %c0_i32_43 = arith.constant 0 : i32
    %103 = arith.maxsi %102, %c0_i32_43 : i32
    %c63_i32_44 = arith.constant 63 : i32
    %104 = arith.minsi %103, %c63_i32_44 : i32
    %c0_i32_45 = arith.constant 0 : i32
    %105 = tpu.memref_slice %arg2[%104, %c0_i32_45] : memref<64x32xf32, #tpu.memory_space<any>> -> memref<1x32xf32, #tpu.memory_space<any>>
    %c0_i32_46 = arith.constant 0 : i32
    %106 = tpu.memref_slice %arg4[%c11_i32, %c0_i32_46] : memref<16x32xf32, #tpu.memory_space<vmem>> -> memref<1x32xf32, #tpu.memory_space<vmem>>
    %107 = tpu.memref_slice %arg5[%c11_i32] : memref<16x!tpu.dma_semaphore, #tpu.memory_space<semaphore_mem>> -> memref<1x!tpu.dma_semaphore, #tpu.memory_space<semaphore_mem>>
    %108 = tpu.memref_squeeze %107 : memref<1x!tpu.dma_semaphore, #tpu.memory_space<semaphore_mem>> -> memref<!tpu.dma_semaphore, #tpu.memory_space<semaphore_mem>>
    tpu.enqueue_dma source(%105 : memref<1x32xf32, #tpu.memory_space<any>>) target(%106 : memref<1x32xf32, #tpu.memory_space<vmem>>) target_semaphore(%108 : memref<!tpu.dma_semaphore, #tpu.memory_space<semaphore_mem>>)
    %c12_i32 = arith.constant 12 : i32
    %109 = arith.addi %0, %c12_i32 : i32
    %110 = arith.index_cast %109 : i32 to index
    %111 = memref.load %arg1[%110] : memref<16xi32, #tpu.memory_space<smem>>
    %c0_i32_47 = arith.constant 0 : i32
    %112 = arith.maxsi %111, %c0_i32_47 : i32
    %c63_i32_48 = arith.constant 63 : i32
    %113 = arith.minsi %112, %c63_i32_48 : i32
    %c0_i32_49 = arith.constant 0 : i32
    %114 = tpu.memref_slice %arg2[%113, %c0_i32_49] : memref<64x32xf32, #tpu.memory_space<any>> -> memref<1x32xf32, #tpu.memory_space<any>>
    %c0_i32_50 = arith.constant 0 : i32
    %115 = tpu.memref_slice %arg4[%c12_i32, %c0_i32_50] : memref<16x32xf32, #tpu.memory_space<vmem>> -> memref<1x32xf32, #tpu.memory_space<vmem>>
    %116 = tpu.memref_slice %arg5[%c12_i32] : memref<16x!tpu.dma_semaphore, #tpu.memory_space<semaphore_mem>> -> memref<1x!tpu.dma_semaphore, #tpu.memory_space<semaphore_mem>>
    %117 = tpu.memref_squeeze %116 : memref<1x!tpu.dma_semaphore, #tpu.memory_space<semaphore_mem>> -> memref<!tpu.dma_semaphore, #tpu.memory_space<semaphore_mem>>
    tpu.enqueue_dma source(%114 : memref<1x32xf32, #tpu.memory_space<any>>) target(%115 : memref<1x32xf32, #tpu.memory_space<vmem>>) target_semaphore(%117 : memref<!tpu.dma_semaphore, #tpu.memory_space<semaphore_mem>>)
    %c13_i32 = arith.constant 13 : i32
    %118 = arith.addi %0, %c13_i32 : i32
    %119 = arith.index_cast %118 : i32 to index
    %120 = memref.load %arg1[%119] : memref<16xi32, #tpu.memory_space<smem>>
    %c0_i32_51 = arith.constant 0 : i32
    %121 = arith.maxsi %120, %c0_i32_51 : i32
    %c63_i32_52 = arith.constant 63 : i32
    %122 = arith.minsi %121, %c63_i32_52 : i32
    %c0_i32_53 = arith.constant 0 : i32
    %123 = tpu.memref_slice %arg2[%122, %c0_i32_53] : memref<64x32xf32, #tpu.memory_space<any>> -> memref<1x32xf32, #tpu.memory_space<any>>
    %c0_i32_54 = arith.constant 0 : i32
    %124 = tpu.memref_slice %arg4[%c13_i32, %c0_i32_54] : memref<16x32xf32, #tpu.memory_space<vmem>> -> memref<1x32xf32, #tpu.memory_space<vmem>>
    %125 = tpu.memref_slice %arg5[%c13_i32] : memref<16x!tpu.dma_semaphore, #tpu.memory_space<semaphore_mem>> -> memref<1x!tpu.dma_semaphore, #tpu.memory_space<semaphore_mem>>
    %126 = tpu.memref_squeeze %125 : memref<1x!tpu.dma_semaphore, #tpu.memory_space<semaphore_mem>> -> memref<!tpu.dma_semaphore, #tpu.memory_space<semaphore_mem>>
    tpu.enqueue_dma source(%123 : memref<1x32xf32, #tpu.memory_space<any>>) target(%124 : memref<1x32xf32, #tpu.memory_space<vmem>>) target_semaphore(%126 : memref<!tpu.dma_semaphore, #tpu.memory_space<semaphore_mem>>)
    %c14_i32 = arith.constant 14 : i32
    %127 = arith.addi %0, %c14_i32 : i32
    %128 = arith.index_cast %127 : i32 to index
    %129 = memref.load %arg1[%128] : memref<16xi32, #tpu.memory_space<smem>>
    %c0_i32_55 = arith.constant 0 : i32
    %130 = arith.maxsi %129, %c0_i32_55 : i32
    %c63_i32_56 = arith.constant 63 : i32
    %131 = arith.minsi %130, %c63_i32_56 : i32
    %c0_i32_57 = arith.constant 0 : i32
    %132 = tpu.memref_slice %arg2[%131, %c0_i32_57] : memref<64x32xf32, #tpu.memory_space<any>> -> memref<1x32xf32, #tpu.memory_space<any>>
    %c0_i32_58 = arith.constant 0 : i32
    %133 = tpu.memref_slice %arg4[%c14_i32, %c0_i32_58] : memref<16x32xf32, #tpu.memory_space<vmem>> -> memref<1x32xf32, #tpu.memory_space<vmem>>
    %134 = tpu.memref_slice %arg5[%c14_i32] : memref<16x!tpu.dma_semaphore, #tpu.memory_space<semaphore_mem>> -> memref<1x!tpu.dma_semaphore, #tpu.memory_space<semaphore_mem>>
    %135 = tpu.memref_squeeze %134 : memref<1x!tpu.dma_semaphore, #tpu.memory_space<semaphore_mem>> -> memref<!tpu.dma_semaphore, #tpu.memory_space<semaphore_mem>>
    tpu.enqueue_dma source(%132 : memref<1x32xf32, #tpu.memory_space<any>>) target(%133 : memref<1x32xf32, #tpu.memory_space<vmem>>) target_semaphore(%135 : memref<!tpu.dma_semaphore, #tpu.memory_space<semaphore_mem>>)
    %c15_i32 = arith.constant 15 : i32
    %136 = arith.addi %0, %c15_i32 : i32
    %137 = arith.index_cast %136 : i32 to index
    %138 = memref.load %arg1[%137] : memref<16xi32, #tpu.memory_space<smem>>
    %c0_i32_59 = arith.constant 0 : i32
    %139 = arith.maxsi %138, %c0_i32_59 : i32
    %c63_i32_60 = arith.constant 63 : i32
    %140 = arith.minsi %139, %c63_i32_60 : i32
    %c0_i32_61 = arith.constant 0 : i32
    %141 = tpu.memref_slice %arg2[%140, %c0_i32_61] : memref<64x32xf32, #tpu.memory_space<any>> -> memref<1x32xf32, #tpu.memory_space<any>>
    %c0_i32_62 = arith.constant 0 : i32
    %142 = tpu.memref_slice %arg4[%c15_i32, %c0_i32_62] : memref<16x32xf32, #tpu.memory_space<vmem>> -> memref<1x32xf32, #tpu.memory_space<vmem>>
    %143 = tpu.memref_slice %arg5[%c15_i32] : memref<16x!tpu.dma_semaphore, #tpu.memory_space<semaphore_mem>> -> memref<1x!tpu.dma_semaphore, #tpu.memory_space<semaphore_mem>>
    %144 = tpu.memref_squeeze %143 : memref<1x!tpu.dma_semaphore, #tpu.memory_space<semaphore_mem>> -> memref<!tpu.dma_semaphore, #tpu.memory_space<semaphore_mem>>
    tpu.enqueue_dma source(%141 : memref<1x32xf32, #tpu.memory_space<any>>) target(%142 : memref<1x32xf32, #tpu.memory_space<vmem>>) target_semaphore(%144 : memref<!tpu.dma_semaphore, #tpu.memory_space<semaphore_mem>>)
    %c16_i32_63 = arith.constant 16 : i32
    %c0_i32_64 = arith.constant 0 : i32
    %c0_i32_65 = arith.constant 0 : i32
    %c0_i32_66 = arith.constant 0 : i32
    %145 = tpu.memref_slice %arg2[%c0_i32_65, %c0_i32_66] : memref<64x32xf32, #tpu.memory_space<any>> -> memref<1x32xf32, #tpu.memory_space<any>>
    %c0_i32_67 = arith.constant 0 : i32
    %146 = tpu.memref_slice %arg4[%c0_i32_64, %c0_i32_67] : memref<16x32xf32, #tpu.memory_space<vmem>> -> memref<1x32xf32, #tpu.memory_space<vmem>>
    %147 = tpu.memref_slice %arg5[%c0_i32_64] : memref<16x!tpu.dma_semaphore, #tpu.memory_space<semaphore_mem>> -> memref<1x!tpu.dma_semaphore, #tpu.memory_space<semaphore_mem>>
    %148 = tpu.memref_squeeze %147 : memref<1x!tpu.dma_semaphore, #tpu.memory_space<semaphore_mem>> -> memref<!tpu.dma_semaphore, #tpu.memory_space<semaphore_mem>>
    tpu.wait_dma2 semaphore(%148 : memref<!tpu.dma_semaphore, #tpu.memory_space<semaphore_mem>>) src(%145 : memref<1x32xf32, #tpu.memory_space<any>>) dst(%146 : memref<1x32xf32, #tpu.memory_space<vmem>>)
    %c1_i32_68 = arith.constant 1 : i32
    %c0_i32_69 = arith.constant 0 : i32
    %c0_i32_70 = arith.constant 0 : i32
    %149 = tpu.memref_slice %arg2[%c0_i32_69, %c0_i32_70] : memref<64x32xf32, #tpu.memory_space<any>> -> memref<1x32xf32, #tpu.memory_space<any>>
    %c0_i32_71 = arith.constant 0 : i32
    %150 = tpu.memref_slice %arg4[%c1_i32_68, %c0_i32_71] : memref<16x32xf32, #tpu.memory_space<vmem>> -> memref<1x32xf32, #tpu.memory_space<vmem>>
    %151 = tpu.memref_slice %arg5[%c1_i32_68] : memref<16x!tpu.dma_semaphore, #tpu.memory_space<semaphore_mem>> -> memref<1x!tpu.dma_semaphore, #tpu.memory_space<semaphore_mem>>
    %152 = tpu.memref_squeeze %151 : memref<1x!tpu.dma_semaphore, #tpu.memory_space<semaphore_mem>> -> memref<!tpu.dma_semaphore, #tpu.memory_space<semaphore_mem>>
    tpu.wait_dma2 semaphore(%152 : memref<!tpu.dma_semaphore, #tpu.memory_space<semaphore_mem>>) src(%149 : memref<1x32xf32, #tpu.memory_space<any>>) dst(%150 : memref<1x32xf32, #tpu.memory_space<vmem>>)
    %c2_i32_72 = arith.constant 2 : i32
    %c0_i32_73 = arith.constant 0 : i32
    %c0_i32_74 = arith.constant 0 : i32
    %153 = tpu.memref_slice %arg2[%c0_i32_73, %c0_i32_74] : memref<64x32xf32, #tpu.memory_space<any>> -> memref<1x32xf32, #tpu.memory_space<any>>
    %c0_i32_75 = arith.constant 0 : i32
    %154 = tpu.memref_slice %arg4[%c2_i32_72, %c0_i32_75] : memref<16x32xf32, #tpu.memory_space<vmem>> -> memref<1x32xf32, #tpu.memory_space<vmem>>
    %155 = tpu.memref_slice %arg5[%c2_i32_72] : memref<16x!tpu.dma_semaphore, #tpu.memory_space<semaphore_mem>> -> memref<1x!tpu.dma_semaphore, #tpu.memory_space<semaphore_mem>>
    %156 = tpu.memref_squeeze %155 : memref<1x!tpu.dma_semaphore, #tpu.memory_space<semaphore_mem>> -> memref<!tpu.dma_semaphore, #tpu.memory_space<semaphore_mem>>
    tpu.wait_dma2 semaphore(%156 : memref<!tpu.dma_semaphore, #tpu.memory_space<semaphore_mem>>) src(%153 : memref<1x32xf32, #tpu.memory_space<any>>) dst(%154 : memref<1x32xf32, #tpu.memory_space<vmem>>)
    %c3_i32_76 = arith.constant 3 : i32
    %c0_i32_77 = arith.constant 0 : i32
    %c0_i32_78 = arith.constant 0 : i32
    %157 = tpu.memref_slice %arg2[%c0_i32_77, %c0_i32_78] : memref<64x32xf32, #tpu.memory_space<any>> -> memref<1x32xf32, #tpu.memory_space<any>>
    %c0_i32_79 = arith.constant 0 : i32
    %158 = tpu.memref_slice %arg4[%c3_i32_76, %c0_i32_79] : memref<16x32xf32, #tpu.memory_space<vmem>> -> memref<1x32xf32, #tpu.memory_space<vmem>>
    %159 = tpu.memref_slice %arg5[%c3_i32_76] : memref<16x!tpu.dma_semaphore, #tpu.memory_space<semaphore_mem>> -> memref<1x!tpu.dma_semaphore, #tpu.memory_space<semaphore_mem>>
    %160 = tpu.memref_squeeze %159 : memref<1x!tpu.dma_semaphore, #tpu.memory_space<semaphore_mem>> -> memref<!tpu.dma_semaphore, #tpu.memory_space<semaphore_mem>>
    tpu.wait_dma2 semaphore(%160 : memref<!tpu.dma_semaphore, #tpu.memory_space<semaphore_mem>>) src(%157 : memref<1x32xf32, #tpu.memory_space<any>>) dst(%158 : memref<1x32xf32, #tpu.memory_space<vmem>>)
    %c4_i32_80 = arith.constant 4 : i32
    %c0_i32_81 = arith.constant 0 : i32
    %c0_i32_82 = arith.constant 0 : i32
    %161 = tpu.memref_slice %arg2[%c0_i32_81, %c0_i32_82] : memref<64x32xf32, #tpu.memory_space<any>> -> memref<1x32xf32, #tpu.memory_space<any>>
    %c0_i32_83 = arith.constant 0 : i32
    %162 = tpu.memref_slice %arg4[%c4_i32_80, %c0_i32_83] : memref<16x32xf32, #tpu.memory_space<vmem>> -> memref<1x32xf32, #tpu.memory_space<vmem>>
    %163 = tpu.memref_slice %arg5[%c4_i32_80] : memref<16x!tpu.dma_semaphore, #tpu.memory_space<semaphore_mem>> -> memref<1x!tpu.dma_semaphore, #tpu.memory_space<semaphore_mem>>
    %164 = tpu.memref_squeeze %163 : memref<1x!tpu.dma_semaphore, #tpu.memory_space<semaphore_mem>> -> memref<!tpu.dma_semaphore, #tpu.memory_space<semaphore_mem>>
    tpu.wait_dma2 semaphore(%164 : memref<!tpu.dma_semaphore, #tpu.memory_space<semaphore_mem>>) src(%161 : memref<1x32xf32, #tpu.memory_space<any>>) dst(%162 : memref<1x32xf32, #tpu.memory_space<vmem>>)
    %c5_i32_84 = arith.constant 5 : i32
    %c0_i32_85 = arith.constant 0 : i32
    %c0_i32_86 = arith.constant 0 : i32
    %165 = tpu.memref_slice %arg2[%c0_i32_85, %c0_i32_86] : memref<64x32xf32, #tpu.memory_space<any>> -> memref<1x32xf32, #tpu.memory_space<any>>
    %c0_i32_87 = arith.constant 0 : i32
    %166 = tpu.memref_slice %arg4[%c5_i32_84, %c0_i32_87] : memref<16x32xf32, #tpu.memory_space<vmem>> -> memref<1x32xf32, #tpu.memory_space<vmem>>
    %167 = tpu.memref_slice %arg5[%c5_i32_84] : memref<16x!tpu.dma_semaphore, #tpu.memory_space<semaphore_mem>> -> memref<1x!tpu.dma_semaphore, #tpu.memory_space<semaphore_mem>>
    %168 = tpu.memref_squeeze %167 : memref<1x!tpu.dma_semaphore, #tpu.memory_space<semaphore_mem>> -> memref<!tpu.dma_semaphore, #tpu.memory_space<semaphore_mem>>
    tpu.wait_dma2 semaphore(%168 : memref<!tpu.dma_semaphore, #tpu.memory_space<semaphore_mem>>) src(%165 : memref<1x32xf32, #tpu.memory_space<any>>) dst(%166 : memref<1x32xf32, #tpu.memory_space<vmem>>)
    %c6_i32_88 = arith.constant 6 : i32
    %c0_i32_89 = arith.constant 0 : i32
    %c0_i32_90 = arith.constant 0 : i32
    %169 = tpu.memref_slice %arg2[%c0_i32_89, %c0_i32_90] : memref<64x32xf32, #tpu.memory_space<any>> -> memref<1x32xf32, #tpu.memory_space<any>>
    %c0_i32_91 = arith.constant 0 : i32
    %170 = tpu.memref_slice %arg4[%c6_i32_88, %c0_i32_91] : memref<16x32xf32, #tpu.memory_space<vmem>> -> memref<1x32xf32, #tpu.memory_space<vmem>>
    %171 = tpu.memref_slice %arg5[%c6_i32_88] : memref<16x!tpu.dma_semaphore, #tpu.memory_space<semaphore_mem>> -> memref<1x!tpu.dma_semaphore, #tpu.memory_space<semaphore_mem>>
    %172 = tpu.memref_squeeze %171 : memref<1x!tpu.dma_semaphore, #tpu.memory_space<semaphore_mem>> -> memref<!tpu.dma_semaphore, #tpu.memory_space<semaphore_mem>>
    tpu.wait_dma2 semaphore(%172 : memref<!tpu.dma_semaphore, #tpu.memory_space<semaphore_mem>>) src(%169 : memref<1x32xf32, #tpu.memory_space<any>>) dst(%170 : memref<1x32xf32, #tpu.memory_space<vmem>>)
    %c7_i32_92 = arith.constant 7 : i32
    %c0_i32_93 = arith.constant 0 : i32
    %c0_i32_94 = arith.constant 0 : i32
    %173 = tpu.memref_slice %arg2[%c0_i32_93, %c0_i32_94] : memref<64x32xf32, #tpu.memory_space<any>> -> memref<1x32xf32, #tpu.memory_space<any>>
    %c0_i32_95 = arith.constant 0 : i32
    %174 = tpu.memref_slice %arg4[%c7_i32_92, %c0_i32_95] : memref<16x32xf32, #tpu.memory_space<vmem>> -> memref<1x32xf32, #tpu.memory_space<vmem>>
    %175 = tpu.memref_slice %arg5[%c7_i32_92] : memref<16x!tpu.dma_semaphore, #tpu.memory_space<semaphore_mem>> -> memref<1x!tpu.dma_semaphore, #tpu.memory_space<semaphore_mem>>
    %176 = tpu.memref_squeeze %175 : memref<1x!tpu.dma_semaphore, #tpu.memory_space<semaphore_mem>> -> memref<!tpu.dma_semaphore, #tpu.memory_space<semaphore_mem>>
    tpu.wait_dma2 semaphore(%176 : memref<!tpu.dma_semaphore, #tpu.memory_space<semaphore_mem>>) src(%173 : memref<1x32xf32, #tpu.memory_space<any>>) dst(%174 : memref<1x32xf32, #tpu.memory_space<vmem>>)
    %c8_i32_96 = arith.constant 8 : i32
    %c0_i32_97 = arith.constant 0 : i32
    %c0_i32_98 = arith.constant 0 : i32
    %177 = tpu.memref_slice %arg2[%c0_i32_97, %c0_i32_98] : memref<64x32xf32, #tpu.memory_space<any>> -> memref<1x32xf32, #tpu.memory_space<any>>
    %c0_i32_99 = arith.constant 0 : i32
    %178 = tpu.memref_slice %arg4[%c8_i32_96, %c0_i32_99] : memref<16x32xf32, #tpu.memory_space<vmem>> -> memref<1x32xf32, #tpu.memory_space<vmem>>
    %179 = tpu.memref_slice %arg5[%c8_i32_96] : memref<16x!tpu.dma_semaphore, #tpu.memory_space<semaphore_mem>> -> memref<1x!tpu.dma_semaphore, #tpu.memory_space<semaphore_mem>>
    %180 = tpu.memref_squeeze %179 : memref<1x!tpu.dma_semaphore, #tpu.memory_space<semaphore_mem>> -> memref<!tpu.dma_semaphore, #tpu.memory_space<semaphore_mem>>
    tpu.wait_dma2 semaphore(%180 : memref<!tpu.dma_semaphore, #tpu.memory_space<semaphore_mem>>) src(%177 : memref<1x32xf32, #tpu.memory_space<any>>) dst(%178 : memref<1x32xf32, #tpu.memory_space<vmem>>)
    %c9_i32_100 = arith.constant 9 : i32
    %c0_i32_101 = arith.constant 0 : i32
    %c0_i32_102 = arith.constant 0 : i32
    %181 = tpu.memref_slice %arg2[%c0_i32_101, %c0_i32_102] : memref<64x32xf32, #tpu.memory_space<any>> -> memref<1x32xf32, #tpu.memory_space<any>>
    %c0_i32_103 = arith.constant 0 : i32
    %182 = tpu.memref_slice %arg4[%c9_i32_100, %c0_i32_103] : memref<16x32xf32, #tpu.memory_space<vmem>> -> memref<1x32xf32, #tpu.memory_space<vmem>>
    %183 = tpu.memref_slice %arg5[%c9_i32_100] : memref<16x!tpu.dma_semaphore, #tpu.memory_space<semaphore_mem>> -> memref<1x!tpu.dma_semaphore, #tpu.memory_space<semaphore_mem>>
    %184 = tpu.memref_squeeze %183 : memref<1x!tpu.dma_semaphore, #tpu.memory_space<semaphore_mem>> -> memref<!tpu.dma_semaphore, #tpu.memory_space<semaphore_mem>>
    tpu.wait_dma2 semaphore(%184 : memref<!tpu.dma_semaphore, #tpu.memory_space<semaphore_mem>>) src(%181 : memref<1x32xf32, #tpu.memory_space<any>>) dst(%182 : memref<1x32xf32, #tpu.memory_space<vmem>>)
    %c10_i32_104 = arith.constant 10 : i32
    %c0_i32_105 = arith.constant 0 : i32
    %c0_i32_106 = arith.constant 0 : i32
    %185 = tpu.memref_slice %arg2[%c0_i32_105, %c0_i32_106] : memref<64x32xf32, #tpu.memory_space<any>> -> memref<1x32xf32, #tpu.memory_space<any>>
    %c0_i32_107 = arith.constant 0 : i32
    %186 = tpu.memref_slice %arg4[%c10_i32_104, %c0_i32_107] : memref<16x32xf32, #tpu.memory_space<vmem>> -> memref<1x32xf32, #tpu.memory_space<vmem>>
    %187 = tpu.memref_slice %arg5[%c10_i32_104] : memref<16x!tpu.dma_semaphore, #tpu.memory_space<semaphore_mem>> -> memref<1x!tpu.dma_semaphore, #tpu.memory_space<semaphore_mem>>
    %188 = tpu.memref_squeeze %187 : memref<1x!tpu.dma_semaphore, #tpu.memory_space<semaphore_mem>> -> memref<!tpu.dma_semaphore, #tpu.memory_space<semaphore_mem>>
    tpu.wait_dma2 semaphore(%188 : memref<!tpu.dma_semaphore, #tpu.memory_space<semaphore_mem>>) src(%185 : memref<1x32xf32, #tpu.memory_space<any>>) dst(%186 : memref<1x32xf32, #tpu.memory_space<vmem>>)
    %c11_i32_108 = arith.constant 11 : i32
    %c0_i32_109 = arith.constant 0 : i32
    %c0_i32_110 = arith.constant 0 : i32
    %189 = tpu.memref_slice %arg2[%c0_i32_109, %c0_i32_110] : memref<64x32xf32, #tpu.memory_space<any>> -> memref<1x32xf32, #tpu.memory_space<any>>
    %c0_i32_111 = arith.constant 0 : i32
    %190 = tpu.memref_slice %arg4[%c11_i32_108, %c0_i32_111] : memref<16x32xf32, #tpu.memory_space<vmem>> -> memref<1x32xf32, #tpu.memory_space<vmem>>
    %191 = tpu.memref_slice %arg5[%c11_i32_108] : memref<16x!tpu.dma_semaphore, #tpu.memory_space<semaphore_mem>> -> memref<1x!tpu.dma_semaphore, #tpu.memory_space<semaphore_mem>>
    %192 = tpu.memref_squeeze %191 : memref<1x!tpu.dma_semaphore, #tpu.memory_space<semaphore_mem>> -> memref<!tpu.dma_semaphore, #tpu.memory_space<semaphore_mem>>
    tpu.wait_dma2 semaphore(%192 : memref<!tpu.dma_semaphore, #tpu.memory_space<semaphore_mem>>) src(%189 : memref<1x32xf32, #tpu.memory_space<any>>) dst(%190 : memref<1x32xf32, #tpu.memory_space<vmem>>)
    %c12_i32_112 = arith.constant 12 : i32
    %c0_i32_113 = arith.constant 0 : i32
    %c0_i32_114 = arith.constant 0 : i32
    %193 = tpu.memref_slice %arg2[%c0_i32_113, %c0_i32_114] : memref<64x32xf32, #tpu.memory_space<any>> -> memref<1x32xf32, #tpu.memory_space<any>>
    %c0_i32_115 = arith.constant 0 : i32
    %194 = tpu.memref_slice %arg4[%c12_i32_112, %c0_i32_115] : memref<16x32xf32, #tpu.memory_space<vmem>> -> memref<1x32xf32, #tpu.memory_space<vmem>>
    %195 = tpu.memref_slice %arg5[%c12_i32_112] : memref<16x!tpu.dma_semaphore, #tpu.memory_space<semaphore_mem>> -> memref<1x!tpu.dma_semaphore, #tpu.memory_space<semaphore_mem>>
    %196 = tpu.memref_squeeze %195 : memref<1x!tpu.dma_semaphore, #tpu.memory_space<semaphore_mem>> -> memref<!tpu.dma_semaphore, #tpu.memory_space<semaphore_mem>>
    tpu.wait_dma2 semaphore(%196 : memref<!tpu.dma_semaphore, #tpu.memory_space<semaphore_mem>>) src(%193 : memref<1x32xf32, #tpu.memory_space<any>>) dst(%194 : memref<1x32xf32, #tpu.memory_space<vmem>>)
    %c13_i32_116 = arith.constant 13 : i32
    %c0_i32_117 = arith.constant 0 : i32
    %c0_i32_118 = arith.constant 0 : i32
    %197 = tpu.memref_slice %arg2[%c0_i32_117, %c0_i32_118] : memref<64x32xf32, #tpu.memory_space<any>> -> memref<1x32xf32, #tpu.memory_space<any>>
    %c0_i32_119 = arith.constant 0 : i32
    %198 = tpu.memref_slice %arg4[%c13_i32_116, %c0_i32_119] : memref<16x32xf32, #tpu.memory_space<vmem>> -> memref<1x32xf32, #tpu.memory_space<vmem>>
    %199 = tpu.memref_slice %arg5[%c13_i32_116] : memref<16x!tpu.dma_semaphore, #tpu.memory_space<semaphore_mem>> -> memref<1x!tpu.dma_semaphore, #tpu.memory_space<semaphore_mem>>
    %200 = tpu.memref_squeeze %199 : memref<1x!tpu.dma_semaphore, #tpu.memory_space<semaphore_mem>> -> memref<!tpu.dma_semaphore, #tpu.memory_space<semaphore_mem>>
    tpu.wait_dma2 semaphore(%200 : memref<!tpu.dma_semaphore, #tpu.memory_space<semaphore_mem>>) src(%197 : memref<1x32xf32, #tpu.memory_space<any>>) dst(%198 : memref<1x32xf32, #tpu.memory_space<vmem>>)
    %c14_i32_120 = arith.constant 14 : i32
    %c0_i32_121 = arith.constant 0 : i32
    %c0_i32_122 = arith.constant 0 : i32
    %201 = tpu.memref_slice %arg2[%c0_i32_121, %c0_i32_122] : memref<64x32xf32, #tpu.memory_space<any>> -> memref<1x32xf32, #tpu.memory_space<any>>
    %c0_i32_123 = arith.constant 0 : i32
    %202 = tpu.memref_slice %arg4[%c14_i32_120, %c0_i32_123] : memref<16x32xf32, #tpu.memory_space<vmem>> -> memref<1x32xf32, #tpu.memory_space<vmem>>
    %203 = tpu.memref_slice %arg5[%c14_i32_120] : memref<16x!tpu.dma_semaphore, #tpu.memory_space<semaphore_mem>> -> memref<1x!tpu.dma_semaphore, #tpu.memory_space<semaphore_mem>>
    %204 = tpu.memref_squeeze %203 : memref<1x!tpu.dma_semaphore, #tpu.memory_space<semaphore_mem>> -> memref<!tpu.dma_semaphore, #tpu.memory_space<semaphore_mem>>
    tpu.wait_dma2 semaphore(%204 : memref<!tpu.dma_semaphore, #tpu.memory_space<semaphore_mem>>) src(%201 : memref<1x32xf32, #tpu.memory_space<any>>) dst(%202 : memref<1x32xf32, #tpu.memory_space<vmem>>)
    %c15_i32_124 = arith.constant 15 : i32
    %c0_i32_125 = arith.constant 0 : i32
    %c0_i32_126 = arith.constant 0 : i32
    %205 = tpu.memref_slice %arg2[%c0_i32_125, %c0_i32_126] : memref<64x32xf32, #tpu.memory_space<any>> -> memref<1x32xf32, #tpu.memory_space<any>>
    %c0_i32_127 = arith.constant 0 : i32
    %206 = tpu.memref_slice %arg4[%c15_i32_124, %c0_i32_127] : memref<16x32xf32, #tpu.memory_space<vmem>> -> memref<1x32xf32, #tpu.memory_space<vmem>>
    %207 = tpu.memref_slice %arg5[%c15_i32_124] : memref<16x!tpu.dma_semaphore, #tpu.memory_space<semaphore_mem>> -> memref<1x!tpu.dma_semaphore, #tpu.memory_space<semaphore_mem>>
    %208 = tpu.memref_squeeze %207 : memref<1x!tpu.dma_semaphore, #tpu.memory_space<semaphore_mem>> -> memref<!tpu.dma_semaphore, #tpu.memory_space<semaphore_mem>>
    tpu.wait_dma2 semaphore(%208 : memref<!tpu.dma_semaphore, #tpu.memory_space<semaphore_mem>>) src(%205 : memref<1x32xf32, #tpu.memory_space<any>>) dst(%206 : memref<1x32xf32, #tpu.memory_space<vmem>>)
    %c16_i32_128 = arith.constant 16 : i32
    %c0 = arith.constant 0 : index
    %c0_129 = arith.constant 0 : index
    %209 = vector.load %arg4[%c0, %c0_129] : memref<16x32xf32, #tpu.memory_space<vmem>>, vector<16x32xf32>
    %c0_130 = arith.constant 0 : index
    %c0_131 = arith.constant 0 : index
    %210 = vector.load %arg3[%c0_130, %c0_131] : memref<16x32xf32, #tpu.memory_space<vmem>>, vector<16x32xf32>
    tpu.vector_store %arg3[%c0_130, %c0_131], %209 {strides = array<i32>} : memref<16x32xf32, #tpu.memory_space<vmem>>, vector<16x32xf32>,
    return
  }
  func.func @transform_1(%arg0: i32, %arg1: memref<16xi32, #tpu.memory_space<smem>>) -> (i32, i32) {
    %c0_i32 = arith.constant 0 : i32
    %c0_i32_0 = arith.constant 0 : i32
    return %arg0, %c0_i32 : i32, i32
  }
}

</mosaic_0001>

<llo_original>
// kernel: tpu_custom_call.1
$region0: #{tpu_custom_call.1}
  #allocation0 [shape = 'u32[]', space=smem, size = 0x4, offset = 0x4, fixed_abs, tag = 'smem constant byte address 0x4 - core index']
  #allocation1 [shape = 'u32[144,128]{1,0:T(1,128)}', space=vmem, size = 0x12000, scoped, tag = 'internal scratch']
  #allocation2 [shape = 'f32[16,32]{1,0:T(8,128)}', space=vmem, size = 0x2000, scoped, tag = 'scratch operand']
  #allocation3 [shape = 's32[16]{0}', space=sflag, size = 0x40, scoped, tag = 'scratch operand']
  #allocation4 [shape = 's32[1]{0}', space=sflag, size = 0x4, scoped, tag = 'scoped memory for tpu_custom_call.1']
  #allocation5 [shape = 'u8[512]{0}', space=smem, size = 0x200, scoped, tag = 'prefetched SMEM operand 0']
  #allocation8 [shape = 's32[]', space=sflag, size = 0x4, offset = 0, fixed_abs, tag = 'sflag constant byte address 0x0 - dummy sync flag']
  #allocation9 [shape = 's32[]', space=sflag, size = 0x4, offset = 0, fixed_abs, tag = 'sflag constant byte address 0x0 - dummy sync flag']
  #allocation10 [shape = 's32[]', space=sflag, size = 0x4, offset = 0, fixed_abs, tag = 'sflag constant byte address 0x0 - dummy sync flag']
  #allocation11 [shape = 's32[]', space=sflag, size = 0x4, offset = 0, fixed_abs, tag = 'sflag constant byte address 0x0 - dummy sync flag']
  #allocation12 [shape = 's32[]', space=sflag, size = 0x4, offset = 0, fixed_abs, tag = 'sflag constant byte address 0x0 - dummy sync flag']
  #allocation13 [shape = 's32[]', space=sflag, size = 0x4, offset = 0, fixed_abs, tag = 'sflag constant byte address 0x0 - dummy sync flag']
  #allocation14 [shape = 's32[]', space=sflag, size = 0x4, offset = 0, fixed_abs, tag = 'sflag constant byte address 0x0 - dummy sync flag']
  #allocation15 [shape = 's32[]', space=sflag, size = 0x4, offset = 0, fixed_abs, tag = 'sflag constant byte address 0x0 - dummy sync flag']
  #allocation16 [shape = 's32[]', space=sflag, size = 0x4, offset = 0, fixed_abs, tag = 'sflag constant byte address 0x0 - dummy sync flag']
  #allocation17 [shape = 's32[]', space=sflag, size = 0x4, offset = 0, fixed_abs, tag = 'sflag constant byte address 0x0 - dummy sync flag']
  #allocation18 [shape = 's32[]', space=sflag, size = 0x4, offset = 0, fixed_abs, tag = 'sflag constant byte address 0x0 - dummy sync flag']
  #allocation19 [shape = 's32[]', space=sflag, size = 0x4, offset = 0, fixed_abs, tag = 'sflag constant byte address 0x0 - dummy sync flag']
  #allocation20 [shape = 's32[]', space=sflag, size = 0x4, offset = 0, fixed_abs, tag = 'sflag constant byte address 0x0 - dummy sync flag']
  #allocation21 [shape = 's32[]', space=sflag, size = 0x4, offset = 0, fixed_abs, tag = 'sflag constant byte address 0x0 - dummy sync flag']
  #allocation22 [shape = 's32[]', space=sflag, size = 0x4, offset = 0, fixed_abs, tag = 'sflag constant byte address 0x0 - dummy sync flag']
  #allocation23 [shape = 's32[]', space=sflag, size = 0x4, offset = 0, fixed_abs, tag = 'sflag constant byte address 0x0 - dummy sync flag']
  %s0 = inlined_call_operand.vmem [shape: s32[16], index: 0, kind: input, shape index: {}]
  %s1 = inlined_call_operand.vmem [shape: f32[64,32], index: 1, kind: input, shape index: {}]
  %s2 = inlined_call_operand.hbm [shape: f32[16,32], index: 2, kind: output, shape index: {}]
  %s3 = sld [smem:[#allocation0]]
  $region490: #{tpu_custom_call.1} parent=0
    _
  %s5 = ssub.s32 1, %s3
  %s6 = scalar_select 0, %s5, %s3
  %s7 = sshll.u32 %s0, 4
  %s8 = int_to_ptr.vmem [resolvable:$true] %s7
  %10 = dma.vmem_to_smem %s8, 16, [#allocation5], [#allocation4]
  %11 = dma.done [#allocation4], 16
  %12 = sfence
  $region1: #{tpu_custom_call.1} parent=0
    #allocation6 [shape = 'u8[8192]{0}', space=vmem, size = 0x2000, scoped, tag = 'output window, operand 0, single buffered']
    #allocation7 [shape = 's32[1]{0}', space=sflag, size = 0x4, scoped, tag = 'scoped memory for tpu_custom_call.1']
    %13 = vsyncpa [#allocation7], 0
    %s14 = smul.u32 0, 16
    %s15 = sld [smem:[#allocation5 + %s14]]
    %p16 = scmp.gt.s32.totalorder %s15, 0
    %s17 = scalar_select %p16, %s15, 0
    %p18 = scmp.lt.s32.totalorder %s17, 63
    %s19 = scalar_select %p18, %s17, 63
    %s20 = scalar_lea.vmem %s1, %s19
    %p22 = scmp.lt.u32.totalorder 1, 8
    %p23 = pneg %p22
    // Predicated region
    $region2: #{tpu_custom_call.1} parent=1 // pred_check
      _
    $region3: #{tpu_custom_call.1} parent=1 // pred_check_branch
      %25 = sbr.rel (%p22) target = $region5
    $region4: #{tpu_custom_call.1} parent=1 // pred_region
      %s41 = sand.u32 1, 7
      %p42 = scmp.eq.s32.totalorder %s41, 0
      %p43 = pneg %p42
      // Predicated region
      $region17: #{tpu_custom_call.1} parent=4 // pred_check
        _
      $region18: #{tpu_custom_call.1} parent=4 // pred_check_branch
        %45 = sbr.rel (%p42) target = $region20
      $region19: #{tpu_custom_call.1} parent=4 // pred_region
        %s46 = sand.u32 1, 7
        %s47 = ssub.s32 1, %s46
        %s48 = scalar_lea.vmem %s20, %s47
        %s49 = ssub.s32 1, %s46
        %s50 = scalar_lea.vmem [#allocation2], %s49
        %s51 = sshll.u32 1, %s46
        %s52 = ssub.s32 %s51, 1
        loop: start=0, step=1, limit=1
        $region21: #{tpu_custom_call.1} parent=19 // loop_pre_header
          _
        $region22: #{tpu_custom_call.1} parent=19 // loop_header
          %s54 = sphi 0, %s58
          %p55 = scmp.ge.s32.totalorder %s54, 1
          %s59 = sphi %s48, %s48
          %s60 = sphi %s50, %s50
        $region23: #{tpu_custom_call.1} parent=19 // loop_header_branch
          %57 = sbr.rel (%p55) target = $region27
        $region24: #{tpu_custom_call.1} parent=19 // loop_body
          %v61 = vld [vmem:[%s59] sm:%s52]
          %62 = vst [vmem:[%s60] sm:%s52] %v61
        $region25: #{tpu_custom_call.1} parent=19 // loop_footer
          %s58 = sadd.s32 1, %s54
        $region26: #{tpu_custom_call.1} parent=19 // loop_footer_branch
          %53 = sbr.rel target = $region22
        $region27: #{tpu_custom_call.1} parent=19 // loop_exit
          _
      $region20: #{tpu_custom_call.1} parent=4 // pred_fallthru
        _
    $region5: #{tpu_custom_call.1} parent=1 // pred_fallthru
      _
    // Predicated region
    $region6: #{tpu_custom_call.1} parent=1 // pred_check
      %p26 = pneg %p22
    $region7: #{tpu_custom_call.1} parent=1 // pred_check_branch
      %28 = sbr.rel (%p26) target = $region9
    $region8: #{tpu_custom_call.1} parent=1 // pred_region
      %s29 = sshll.u32 1, 1
      %s30 = ssub.s32 %s29, 1
      loop: start=0, step=1, limit=1
      $region10: #{tpu_custom_call.1} parent=8 // loop_pre_header
        _
      $region11: #{tpu_custom_call.1} parent=8 // loop_header
        %s32 = sphi 0, %s36
        %p33 = scmp.ge.s32.totalorder %s32, 1
        %s37 = sphi %s20, %s20
        %s38 = sphi [#allocation2], [#allocation2]
      $region12: #{tpu_custom_call.1} parent=8 // loop_header_branch
        %35 = sbr.rel (%p33) target = $region16
      $region13: #{tpu_custom_call.1} parent=8 // loop_body
        %v39 = vld [vmem:[%s37] sm:%s30]
        %40 = vst [vmem:[%s38] sm:%s30] %v39
      $region14: #{tpu_custom_call.1} parent=8 // loop_footer
        %s36 = sadd.s32 1, %s32
      $region15: #{tpu_custom_call.1} parent=8 // loop_footer_branch
        %31 = sbr.rel target = $region11
      $region16: #{tpu_custom_call.1} parent=8 // loop_exit
        _
    $region9: #{tpu_custom_call.1} parent=1 // pred_fallthru
      _
    // Predicated region
    $region28: #{tpu_custom_call.1} parent=1 // pred_check
      _
    $region29: #{tpu_custom_call.1} parent=1 // pred_check_branch
      %65 = sbr.rel (0) target = $region31
    $region30: #{tpu_custom_call.1} parent=1 // pred_region
      %66 = vsyncadd [#allocation3], 16
    $region31: #{tpu_custom_call.1} parent=1 // pred_fallthru
      _
    %s67 = sadd.s32 %s14, 1
    %s68 = sld [smem:[#allocation5 + %s67]]
    %p69 = scmp.gt.s32.totalorder %s68, 0
    %s70 = scalar_select %p69, %s68, 0
    %p71 = scmp.lt.s32.totalorder %s70, 63
    %s72 = scalar_select %p71, %s70, 63
    %s73 = scalar_lea.vmem %s1, %s72
    %s74 = scalar_lea.vmem [#allocation2], 1
    %s75 = scalar_lea.sflag [#allocation3], 1
    %p77 = scmp.lt.u32.totalorder 1, 8
    %p78 = pneg %p77
    // Predicated region
    $region32: #{tpu_custom_call.1} parent=1 // pred_check
      _
    $region33: #{tpu_custom_call.1} parent=1 // pred_check_branch
      %80 = sbr.rel (%p77) target = $region35
    $region34: #{tpu_custom_call.1} parent=1 // pred_region
      %s96 = sand.u32 1, 7
      %p97 = scmp.eq.s32.totalorder %s96, 0
      %p98 = pneg %p97
      // Predicated region
      $region47: #{tpu_custom_call.1} parent=34 // pred_check
        _
      $region48: #{tpu_custom_call.1} parent=34 // pred_check_branch
        %100 = sbr.rel (%p97) target = $region50
      $region49: #{tpu_custom_call.1} parent=34 // pred_region
        %s101 = sand.u32 1, 7
        %s102 = ssub.s32 1, %s101
        %s103 = scalar_lea.vmem %s73, %s102
        %s104 = ssub.s32 1, %s101
        %s105 = scalar_lea.vmem %s74, %s104 [#allocation2]
        %s106 = sshll.u32 1, %s101
        %s107 = ssub.s32 %s106, 1
        loop: start=0, step=1, limit=1
        $region51: #{tpu_custom_call.1} parent=49 // loop_pre_header
          _
        $region52: #{tpu_custom_call.1} parent=49 // loop_header
          %s109 = sphi 0, %s113
          %p110 = scmp.ge.s32.totalorder %s109, 1
          %s114 = sphi %s103, %s103
          %s115 = sphi %s105, %s105
        $region53: #{tpu_custom_call.1} parent=49 // loop_header_branch
          %112 = sbr.rel (%p110) target = $region57
        $region54: #{tpu_custom_call.1} parent=49 // loop_body
          %v116 = vld [vmem:[%s114] sm:%s107]
          %117 = vst [vmem:[%s115] sm:%s107] %v116
        $region55: #{tpu_custom_call.1} parent=49 // loop_footer
          %s113 = sadd.s32 1, %s109
        $region56: #{tpu_custom_call.1} parent=49 // loop_footer_branch
          %108 = sbr.rel target = $region52
        $region57: #{tpu_custom_call.1} parent=49 // loop_exit
          _
      $region50: #{tpu_custom_call.1} parent=34 // pred_fallthru
        _
    $region35: #{tpu_custom_call.1} parent=1 // pred_fallthru
      _
    // Predicated region
    $region36: #{tpu_custom_call.1} parent=1 // pred_check
      %p81 = pneg %p77
    $region37: #{tpu_custom_call.1} parent=1 // pred_check_branch
      %83 = sbr.rel (%p81) target = $region39
    $region38: #{tpu_custom_call.1} parent=1 // pred_region
      %s84 = sshll.u32 1, 1
      %s85 = ssub.s32 %s84, 1
      loop: start=0, step=1, limit=1
      $region40: #{tpu_custom_call.1} parent=38 // loop_pre_header
        _
      $region41: #{tpu_custom_call.1} parent=38 // loop_header
        %s87 = sphi 0, %s91
        %p88 = scmp.ge.s32.totalorder %s87, 1
        %s92 = sphi %s73, %s73
        %s93 = sphi %s74, %s74
      $region42: #{tpu_custom_call.1} parent=38 // loop_header_branch
        %90 = sbr.rel (%p88) target = $region46
      $region43: #{tpu_custom_call.1} parent=38 // loop_body
        %v94 = vld [vmem:[%s92] sm:%s85]
        %95 = vst [vmem:[%s93] sm:%s85] %v94
      $region44: #{tpu_custom_call.1} parent=38 // loop_footer
        %s91 = sadd.s32 1, %s87
      $region45: #{tpu_custom_call.1} parent=38 // loop_footer_branch
        %86 = sbr.rel target = $region41
      $region46: #{tpu_custom_call.1} parent=38 // loop_exit
        _
    $region39: #{tpu_custom_call.1} parent=1 // pred_fallthru
      _
    // Predicated region
    $region58: #{tpu_custom_call.1} parent=1 // pred_check
      _
    $region59: #{tpu_custom_call.1} parent=1 // pred_check_branch
      %120 = sbr.rel (0) target = $region61
    $region60: #{tpu_custom_call.1} parent=1 // pred_region
      %121 = vsyncadd %s75, 16
    $region61: #{tpu_custom_call.1} parent=1 // pred_fallthru
      _
    %s122 = sadd.s32 %s14, 2
    %s123 = sld [smem:[#allocation5 + %s122]]
    %p124 = scmp.gt.s32.totalorder %s123, 0
    %s125 = scalar_select %p124, %s123, 0
    %p126 = scmp.lt.s32.totalorder %s125, 63
    %s127 = scalar_select %p126, %s125, 63
    %s128 = scalar_lea.vmem %s1, %s127
    %s129 = scalar_lea.vmem [#allocation2], 2
    %s130 = scalar_lea.sflag [#allocation3], 2
    %p132 = scmp.lt.u32.totalorder 1, 8
    %p133 = pneg %p132
    // Predicated region
    $region62: #{tpu_custom_call.1} parent=1 // pred_check
      _
    $region63: #{tpu_custom_call.1} parent=1 // pred_check_branch
      %135 = sbr.rel (%p132) target = $region65
    $region64: #{tpu_custom_call.1} parent=1 // pred_region
      %s151 = sand.u32 1, 7
      %p152 = scmp.eq.s32.totalorder %s151, 0
      %p153 = pneg %p152
      // Predicated region
      $region77: #{tpu_custom_call.1} parent=64 // pred_check
        _
      $region78: #{tpu_custom_call.1} parent=64 // pred_check_branch
        %155 = sbr.rel (%p152) target = $region80
      $region79: #{tpu_custom_call.1} parent=64 // pred_region
        %s156 = sand.u32 1, 7
        %s157 = ssub.s32 1, %s156
        %s158 = scalar_lea.vmem %s128, %s157
        %s159 = ssub.s32 1, %s156
        %s160 = scalar_lea.vmem %s129, %s159 [#allocation2]
        %s161 = sshll.u32 1, %s156
        %s162 = ssub.s32 %s161, 1
        loop: start=0, step=1, limit=1
        $region81: #{tpu_custom_call.1} parent=79 // loop_pre_header
          _
        $region82: #{tpu_custom_call.1} parent=79 // loop_header
          %s164 = sphi 0, %s168
          %p165 = scmp.ge.s32.totalorder %s164, 1
          %s169 = sphi %s158, %s158
          %s170 = sphi %s160, %s160
        $region83: #{tpu_custom_call.1} parent=79 // loop_header_branch
          %167 = sbr.rel (%p165) target = $region87
        $region84: #{tpu_custom_call.1} parent=79 // loop_body
          %v171 = vld [vmem:[%s169] sm:%s162]
          %172 = vst [vmem:[%s170] sm:%s162] %v171
        $region85: #{tpu_custom_call.1} parent=79 // loop_footer
          %s168 = sadd.s32 1, %s164
        $region86: #{tpu_custom_call.1} parent=79 // loop_footer_branch
          %163 = sbr.rel target = $region82
        $region87: #{tpu_custom_call.1} parent=79 // loop_exit
          _
      $region80: #{tpu_custom_call.1} parent=64 // pred_fallthru
        _
    $region65: #{tpu_custom_call.1} parent=1 // pred_fallthru
      _
    // Predicated region
    $region66: #{tpu_custom_call.1} parent=1 // pred_check
      %p136 = pneg %p132
    $region67: #{tpu_custom_call.1} parent=1 // pred_check_branch
      %138 = sbr.rel (%p136) target = $region69
    $region68: #{tpu_custom_call.1} parent=1 // pred_region
      %s139 = sshll.u32 1, 1
      %s140 = ssub.s32 %s139, 1
      loop: start=0, step=1, limit=1
      $region70: #{tpu_custom_call.1} parent=68 // loop_pre_header
        _
      $region71: #{tpu_custom_call.1} parent=68 // loop_header
        %s142 = sphi 0, %s146
        %p143 = scmp.ge.s32.totalorder %s142, 1
        %s147 = sphi %s128, %s128
        %s148 = sphi %s129, %s129
      $region72: #{tpu_custom_call.1} parent=68 // loop_header_branch
        %145 = sbr.rel (%p143) target = $region76
      $region73: #{tpu_custom_call.1} parent=68 // loop_body
        %v149 = vld [vmem:[%s147] sm:%s140]
        %150 = vst [vmem:[%s148] sm:%s140] %v149
      $region74: #{tpu_custom_call.1} parent=68 // loop_footer
        %s146 = sadd.s32 1, %s142
      $region75: #{tpu_custom_call.1} parent=68 // loop_footer_branch
        %141 = sbr.rel target = $region71
      $region76: #{tpu_custom_call.1} parent=68 // loop_exit
        _
    $region69: #{tpu_custom_call.1} parent=1 // pred_fallthru
      _
    // Predicated region
    $region88: #{tpu_custom_call.1} parent=1 // pred_check
      _
    $region89: #{tpu_custom_call.1} parent=1 // pred_check_branch
      %175 = sbr.rel (0) target = $region91
    $region90: #{tpu_custom_call.1} parent=1 // pred_region
      %176 = vsyncadd %s130, 16
    $region91: #{tpu_custom_call.1} parent=1 // pred_fallthru
      _
    %s177 = sadd.s32 %s14, 3
    %s178 = sld [smem:[#allocation5 + %s177]]
    %p179 = scmp.gt.s32.totalorder %s178, 0
    %s180 = scalar_select %p179, %s178, 0
    %p181 = scmp.lt.s32.totalorder %s180, 63
    %s182 = scalar_select %p181, %s180, 63
    %s183 = scalar_lea.vmem %s1, %s182
    %s184 = scalar_lea.vmem [#allocation2], 3
    %s185 = scalar_lea.sflag [#allocation3], 3
    %p187 = scmp.lt.u32.totalorder 1, 8
    %p188 = pneg %p187
    // Predicated region
    $region92: #{tpu_custom_call.1} parent=1 // pred_check
      _
    $region93: #{tpu_custom_call.1} parent=1 // pred_check_branch
      %190 = sbr.rel (%p187) target = $region95
    $region94: #{tpu_custom_call.1} parent=1 // pred_region
      %s206 = sand.u32 1, 7
      %p207 = scmp.eq.s32.totalorder %s206, 0
      %p208 = pneg %p207
      // Predicated region
      $region107: #{tpu_custom_call.1} parent=94 // pred_check
        _
      $region108: #{tpu_custom_call.1} parent=94 // pred_check_branch
        %210 = sbr.rel (%p207) target = $region110
      $region109: #{tpu_custom_call.1} parent=94 // pred_region
        %s211 = sand.u32 1, 7
        %s212 = ssub.s32 1, %s211
        %s213 = scalar_lea.vmem %s183, %s212
        %s214 = ssub.s32 1, %s211
        %s215 = scalar_lea.vmem %s184, %s214 [#allocation2]
        %s216 = sshll.u32 1, %s211
        %s217 = ssub.s32 %s216, 1
        loop: start=0, step=1, limit=1
        $region111: #{tpu_custom_call.1} parent=109 // loop_pre_header
          _
        $region112: #{tpu_custom_call.1} parent=109 // loop_header
          %s219 = sphi 0, %s223
          %p220 = scmp.ge.s32.totalorder %s219, 1
          %s224 = sphi %s213, %s213
          %s225 = sphi %s215, %s215
        $region113: #{tpu_custom_call.1} parent=109 // loop_header_branch
          %222 = sbr.rel (%p220) target = $region117
        $region114: #{tpu_custom_call.1} parent=109 // loop_body
          %v226 = vld [vmem:[%s224] sm:%s217]
          %227 = vst [vmem:[%s225] sm:%s217] %v226
        $region115: #{tpu_custom_call.1} parent=109 // loop_footer
          %s223 = sadd.s32 1, %s219
        $region116: #{tpu_custom_call.1} parent=109 // loop_footer_branch
          %218 = sbr.rel target = $region112
        $region117: #{tpu_custom_call.1} parent=109 // loop_exit
          _
      $region110: #{tpu_custom_call.1} parent=94 // pred_fallthru
        _
    $region95: #{tpu_custom_call.1} parent=1 // pred_fallthru
      _
    // Predicated region
    $region96: #{tpu_custom_call.1} parent=1 // pred_check
      %p191 = pneg %p187
    $region97: #{tpu_custom_call.1} parent=1 // pred_check_branch
      %193 = sbr.rel (%p191) target = $region99
    $region98: #{tpu_custom_call.1} parent=1 // pred_region
      %s194 = sshll.u32 1, 1
      %s195 = ssub.s32 %s194, 1
      loop: start=0, step=1, limit=1
      $region100: #{tpu_custom_call.1} parent=98 // loop_pre_header
        _
      $region101: #{tpu_custom_call.1} parent=98 // loop_header
        %s197 = sphi 0, %s201
        %p198 = scmp.ge.s32.totalorder %s197, 1
        %s202 = sphi %s183, %s183
        %s203 = sphi %s184, %s184
      $region102: #{tpu_custom_call.1} parent=98 // loop_header_branch
        %200 = sbr.rel (%p198) target = $region106
      $region103: #{tpu_custom_call.1} parent=98 // loop_body
        %v204 = vld [vmem:[%s202] sm:%s195]
        %205 = vst [vmem:[%s203] sm:%s195] %v204
      $region104: #{tpu_custom_call.1} parent=98 // loop_footer
        %s201 = sadd.s32 1, %s197
      $region105: #{tpu_custom_call.1} parent=98 // loop_footer_branch
        %196 = sbr.rel target = $region101
      $region106: #{tpu_custom_call.1} parent=98 // loop_exit
        _
    $region99: #{tpu_custom_call.1} parent=1 // pred_fallthru
      _
    // Predicated region
    $region118: #{tpu_custom_call.1} parent=1 // pred_check
      _
    $region119: #{tpu_custom_call.1} parent=1 // pred_check_branch
      %230 = sbr.rel (0) target = $region121
    $region120: #{tpu_custom_call.1} parent=1 // pred_region
      %231 = vsyncadd %s185, 16
    $region121: #{tpu_custom_call.1} parent=1 // pred_fallthru
      _
    %s232 = sadd.s32 %s14, 4
    %s233 = sld [smem:[#allocation5 + %s232]]
    %p234 = scmp.gt.s32.totalorder %s233, 0
    %s235 = scalar_select %p234, %s233, 0
    %p236 = scmp.lt.s32.totalorder %s235, 63
    %s237 = scalar_select %p236, %s235, 63
    %s238 = scalar_lea.vmem %s1, %s237
    %s239 = scalar_lea.vmem [#allocation2], 4
    %s240 = scalar_lea.sflag [#allocation3], 4
    %p242 = scmp.lt.u32.totalorder 1, 8
    %p243 = pneg %p242
    // Predicated region
    $region122: #{tpu_custom_call.1} parent=1 // pred_check
      _
    $region123: #{tpu_custom_call.1} parent=1 // pred_check_branch
      %245 = sbr.rel (%p242) target = $region125
    $region124: #{tpu_custom_call.1} parent=1 // pred_region
      %s261 = sand.u32 1, 7
      %p262 = scmp.eq.s32.totalorder %s261, 0
      %p263 = pneg %p262
      // Predicated region
      $region137: #{tpu_custom_call.1} parent=124 // pred_check
        _
      $region138: #{tpu_custom_call.1} parent=124 // pred_check_branch
        %265 = sbr.rel (%p262) target = $region140
      $region139: #{tpu_custom_call.1} parent=124 // pred_region
        %s266 = sand.u32 1, 7
        %s267 = ssub.s32 1, %s266
        %s268 = scalar_lea.vmem %s238, %s267
        %s269 = ssub.s32 1, %s266
        %s270 = scalar_lea.vmem %s239, %s269 [#allocation2]
        %s271 = sshll.u32 1, %s266
        %s272 = ssub.s32 %s271, 1
        loop: start=0, step=1, limit=1
        $region141: #{tpu_custom_call.1} parent=139 // loop_pre_header
          _
        $region142: #{tpu_custom_call.1} parent=139 // loop_header
          %s274 = sphi 0, %s278
          %p275 = scmp.ge.s32.totalorder %s274, 1
          %s279 = sphi %s268, %s268
          %s280 = sphi %s270, %s270
        $region143: #{tpu_custom_call.1} parent=139 // loop_header_branch
          %277 = sbr.rel (%p275) target = $region147
        $region144: #{tpu_custom_call.1} parent=139 // loop_body
          %v281 = vld [vmem:[%s279] sm:%s272]
          %282 = vst [vmem:[%s280] sm:%s272] %v281
        $region145: #{tpu_custom_call.1} parent=139 // loop_footer
          %s278 = sadd.s32 1, %s274
        $region146: #{tpu_custom_call.1} parent=139 // loop_footer_branch
          %273 = sbr.rel target = $region142
        $region147: #{tpu_custom_call.1} parent=139 // loop_exit
          _
      $region140: #{tpu_custom_call.1} parent=124 // pred_fallthru
        _
    $region125: #{tpu_custom_call.1} parent=1 // pred_fallthru
      _
    // Predicated region
    $region126: #{tpu_custom_call.1} parent=1 // pred_check
      %p246 = pneg %p242
    $region127: #{tpu_custom_call.1} parent=1 // pred_check_branch
      %248 = sbr.rel (%p246) target = $region129
    $region128: #{tpu_custom_call.1} parent=1 // pred_region
      %s249 = sshll.u32 1, 1
      %s250 = ssub.s32 %s249, 1
      loop: start=0, step=1, limit=1
      $region130: #{tpu_custom_call.1} parent=128 // loop_pre_header
        _
      $region131: #{tpu_custom_call.1} parent=128 // loop_header
        %s252 = sphi 0, %s256
        %p253 = scmp.ge.s32.totalorder %s252, 1
        %s257 = sphi %s238, %s238
        %s258 = sphi %s239, %s239
      $region132: #{tpu_custom_call.1} parent=128 // loop_header_branch
        %255 = sbr.rel (%p253) target = $region136
      $region133: #{tpu_custom_call.1} parent=128 // loop_body
        %v259 = vld [vmem:[%s257] sm:%s250]
        %260 = vst [vmem:[%s258] sm:%s250] %v259
      $region134: #{tpu_custom_call.1} parent=128 // loop_footer
        %s256 = sadd.s32 1, %s252
      $region135: #{tpu_custom_call.1} parent=128 // loop_footer_branch
        %251 = sbr.rel target = $region131
      $region136: #{tpu_custom_call.1} parent=128 // loop_exit
        _
    $region129: #{tpu_custom_call.1} parent=1 // pred_fallthru
      _
    // Predicated region
    $region148: #{tpu_custom_call.1} parent=1 // pred_check
      _
    $region149: #{tpu_custom_call.1} parent=1 // pred_check_branch
      %285 = sbr.rel (0) target = $region151
    $region150: #{tpu_custom_call.1} parent=1 // pred_region
      %286 = vsyncadd %s240, 16
    $region151: #{tpu_custom_call.1} parent=1 // pred_fallthru
      _
    %s287 = sadd.s32 %s14, 5
    %s288 = sld [smem:[#allocation5 + %s287]]
    %p289 = scmp.gt.s32.totalorder %s288, 0
    %s290 = scalar_select %p289, %s288, 0
    %p291 = scmp.lt.s32.totalorder %s290, 63
    %s292 = scalar_select %p291, %s290, 63
    %s293 = scalar_lea.vmem %s1, %s292
    %s294 = scalar_lea.vmem [#allocation2], 5
    %s295 = scalar_lea.sflag [#allocation3], 5
    %p297 = scmp.lt.u32.totalorder 1, 8
    %p298 = pneg %p297
    // Predicated region
    $region152: #{tpu_custom_call.1} parent=1 // pred_check
      _
    $region153: #{tpu_custom_call.1} parent=1 // pred_check_branch
      %300 = sbr.rel (%p297) target = $region155
    $region154: #{tpu_custom_call.1} parent=1 // pred_region
      %s316 = sand.u32 1, 7
      %p317 = scmp.eq.s32.totalorder %s316, 0
      %p318 = pneg %p317
      // Predicated region
      $region167: #{tpu_custom_call.1} parent=154 // pred_check
        _
      $region168: #{tpu_custom_call.1} parent=154 // pred_check_branch
        %320 = sbr.rel (%p317) target = $region170
      $region169: #{tpu_custom_call.1} parent=154 // pred_region
        %s321 = sand.u32 1, 7
        %s322 = ssub.s32 1, %s321
        %s323 = scalar_lea.vmem %s293, %s322
        %s324 = ssub.s32 1, %s321
        %s325 = scalar_lea.vmem %s294, %s324 [#allocation2]
        %s326 = sshll.u32 1, %s321
        %s327 = ssub.s32 %s326, 1
        loop: start=0, step=1, limit=1
        $region171: #{tpu_custom_call.1} parent=169 // loop_pre_header
          _
        $region172: #{tpu_custom_call.1} parent=169 // loop_header
          %s329 = sphi 0, %s333
          %p330 = scmp.ge.s32.totalorder %s329, 1
          %s334 = sphi %s323, %s323
          %s335 = sphi %s325, %s325
        $region173: #{tpu_custom_call.1} parent=169 // loop_header_branch
          %332 = sbr.rel (%p330) target = $region177
        $region174: #{tpu_custom_call.1} parent=169 // loop_body
          %v336 = vld [vmem:[%s334] sm:%s327]
          %337 = vst [vmem:[%s335] sm:%s327] %v336
        $region175: #{tpu_custom_call.1} parent=169 // loop_footer
          %s333 = sadd.s32 1, %s329
        $region176: #{tpu_custom_call.1} parent=169 // loop_footer_branch
          %328 = sbr.rel target = $region172
        $region177: #{tpu_custom_call.1} parent=169 // loop_exit
          _
      $region170: #{tpu_custom_call.1} parent=154 // pred_fallthru
        _
    $region155: #{tpu_custom_call.1} parent=1 // pred_fallthru
      _
    // Predicated region
    $region156: #{tpu_custom_call.1} parent=1 // pred_check
      %p301 = pneg %p297
    $region157: #{tpu_custom_call.1} parent=1 // pred_check_branch
      %303 = sbr.rel (%p301) target = $region159
    $region158: #{tpu_custom_call.1} parent=1 // pred_region
      %s304 = sshll.u32 1, 1
      %s305 = ssub.s32 %s304, 1
      loop: start=0, step=1, limit=1
      $region160: #{tpu_custom_call.1} parent=158 // loop_pre_header
        _
      $region161: #{tpu_custom_call.1} parent=158 // loop_header
        %s307 = sphi 0, %s311
        %p308 = scmp.ge.s32.totalorder %s307, 1
        %s312 = sphi %s293, %s293
        %s313 = sphi %s294, %s294
      $region162: #{tpu_custom_call.1} parent=158 // loop_header_branch
        %310 = sbr.rel (%p308) target = $region166
      $region163: #{tpu_custom_call.1} parent=158 // loop_body
        %v314 = vld [vmem:[%s312] sm:%s305]
        %315 = vst [vmem:[%s313] sm:%s305] %v314
      $region164: #{tpu_custom_call.1} parent=158 // loop_footer
        %s311 = sadd.s32 1, %s307
      $region165: #{tpu_custom_call.1} parent=158 // loop_footer_branch
        %306 = sbr.rel target = $region161
      $region166: #{tpu_custom_call.1} parent=158 // loop_exit
        _
    $region159: #{tpu_custom_call.1} parent=1 // pred_fallthru
      _
    // Predicated region
    $region178: #{tpu_custom_call.1} parent=1 // pred_check
      _
    $region179: #{tpu_custom_call.1} parent=1 // pred_check_branch
      %340 = sbr.rel (0) target = $region181
    $region180: #{tpu_custom_call.1} parent=1 // pred_region
      %341 = vsyncadd %s295, 16
    $region181: #{tpu_custom_call.1} parent=1 // pred_fallthru
      _
    %s342 = sadd.s32 %s14, 6
    %s343 = sld [smem:[#allocation5 + %s342]]
    %p344 = scmp.gt.s32.totalorder %s343, 0
    %s345 = scalar_select %p344, %s343, 0
    %p346 = scmp.lt.s32.totalorder %s345, 63
    %s347 = scalar_select %p346, %s345, 63
    %s348 = scalar_lea.vmem %s1, %s347
    %s349 = scalar_lea.vmem [#allocation2], 6
    %s350 = scalar_lea.sflag [#allocation3], 6
    %p352 = scmp.lt.u32.totalorder 1, 8
    %p353 = pneg %p352
    // Predicated region
    $region182: #{tpu_custom_call.1} parent=1 // pred_check
      _
    $region183: #{tpu_custom_call.1} parent=1 // pred_check_branch
      %355 = sbr.rel (%p352) target = $region185
    $region184: #{tpu_custom_call.1} parent=1 // pred_region
      %s371 = sand.u32 1, 7
      %p372 = scmp.eq.s32.totalorder %s371, 0
      %p373 = pneg %p372
      // Predicated region
      $region197: #{tpu_custom_call.1} parent=184 // pred_check
        _
      $region198: #{tpu_custom_call.1} parent=184 // pred_check_branch
        %375 = sbr.rel (%p372) target = $region200
      $region199: #{tpu_custom_call.1} parent=184 // pred_region
        %s376 = sand.u32 1, 7
        %s377 = ssub.s32 1, %s376
        %s378 = scalar_lea.vmem %s348, %s377
        %s379 = ssub.s32 1, %s376
        %s380 = scalar_lea.vmem %s349, %s379 [#allocation2]
        %s381 = sshll.u32 1, %s376
        %s382 = ssub.s32 %s381, 1
        loop: start=0, step=1, limit=1
        $region201: #{tpu_custom_call.1} parent=199 // loop_pre_header
          _
        $region202: #{tpu_custom_call.1} parent=199 // loop_header
          %s384 = sphi 0, %s388
          %p385 = scmp.ge.s32.totalorder %s384, 1
          %s389 = sphi %s378, %s378
          %s390 = sphi %s380, %s380
        $region203: #{tpu_custom_call.1} parent=199 // loop_header_branch
          %387 = sbr.rel (%p385) target = $region207
        $region204: #{tpu_custom_call.1} parent=199 // loop_body
          %v391 = vld [vmem:[%s389] sm:%s382]
          %392 = vst [vmem:[%s390] sm:%s382] %v391
        $region205: #{tpu_custom_call.1} parent=199 // loop_footer
          %s388 = sadd.s32 1, %s384
        $region206: #{tpu_custom_call.1} parent=199 // loop_footer_branch
          %383 = sbr.rel target = $region202
        $region207: #{tpu_custom_call.1} parent=199 // loop_exit
          _
      $region200: #{tpu_custom_call.1} parent=184 // pred_fallthru
        _
    $region185: #{tpu_custom_call.1} parent=1 // pred_fallthru
      _
    // Predicated region
    $region186: #{tpu_custom_call.1} parent=1 // pred_check
      %p356 = pneg %p352
    $region187: #{tpu_custom_call.1} parent=1 // pred_check_branch
      %358 = sbr.rel (%p356) target = $region189
    $region188: #{tpu_custom_call.1} parent=1 // pred_region
      %s359 = sshll.u32 1, 1
      %s360 = ssub.s32 %s359, 1
      loop: start=0, step=1, limit=1
      $region190: #{tpu_custom_call.1} parent=188 // loop_pre_header
        _
      $region191: #{tpu_custom_call.1} parent=188 // loop_header
        %s362 = sphi 0, %s366
        %p363 = scmp.ge.s32.totalorder %s362, 1
        %s367 = sphi %s348, %s348
        %s368 = sphi %s349, %s349
      $region192: #{tpu_custom_call.1} parent=188 // loop_header_branch
        %365 = sbr.rel (%p363) target = $region196
      $region193: #{tpu_custom_call.1} parent=188 // loop_body
        %v369 = vld [vmem:[%s367] sm:%s360]
        %370 = vst [vmem:[%s368] sm:%s360] %v369
      $region194: #{tpu_custom_call.1} parent=188 // loop_footer
        %s366 = sadd.s32 1, %s362
      $region195: #{tpu_custom_call.1} parent=188 // loop_footer_branch
        %361 = sbr.rel target = $region191
      $region196: #{tpu_custom_call.1} parent=188 // loop_exit
        _
    $region189: #{tpu_custom_call.1} parent=1 // pred_fallthru
      _
    // Predicated region
    $region208: #{tpu_custom_call.1} parent=1 // pred_check
      _
    $region209: #{tpu_custom_call.1} parent=1 // pred_check_branch
      %395 = sbr.rel (0) target = $region211
    $region210: #{tpu_custom_call.1} parent=1 // pred_region
      %396 = vsyncadd %s350, 16
    $region211: #{tpu_custom_call.1} parent=1 // pred_fallthru
      _
    %s397 = sadd.s32 %s14, 7
    %s398 = sld [smem:[#allocation5 + %s397]]
    %p399 = scmp.gt.s32.totalorder %s398, 0
    %s400 = scalar_select %p399, %s398, 0
    %p401 = scmp.lt.s32.totalorder %s400, 63
    %s402 = scalar_select %p401, %s400, 63
    %s403 = scalar_lea.vmem %s1, %s402
    %s404 = scalar_lea.vmem [#allocation2], 7
    %s405 = scalar_lea.sflag [#allocation3], 7
    %p407 = scmp.lt.u32.totalorder 1, 8
    %p408 = pneg %p407
    // Predicated region
    $region212: #{tpu_custom_call.1} parent=1 // pred_check
      _
    $region213: #{tpu_custom_call.1} parent=1 // pred_check_branch
      %410 = sbr.rel (%p407) target = $region215
    $region214: #{tpu_custom_call.1} parent=1 // pred_region
      %s426 = sand.u32 1, 7
      %p427 = scmp.eq.s32.totalorder %s426, 0
      %p428 = pneg %p427
      // Predicated region
      $region227: #{tpu_custom_call.1} parent=214 // pred_check
        _
      $region228: #{tpu_custom_call.1} parent=214 // pred_check_branch
        %430 = sbr.rel (%p427) target = $region230
      $region229: #{tpu_custom_call.1} parent=214 // pred_region
        %s431 = sand.u32 1, 7
        %s432 = ssub.s32 1, %s431
        %s433 = scalar_lea.vmem %s403, %s432
        %s434 = ssub.s32 1, %s431
        %s435 = scalar_lea.vmem %s404, %s434 [#allocation2]
        %s436 = sshll.u32 1, %s431
        %s437 = ssub.s32 %s436, 1
        loop: start=0, step=1, limit=1
        $region231: #{tpu_custom_call.1} parent=229 // loop_pre_header
          _
        $region232: #{tpu_custom_call.1} parent=229 // loop_header
          %s439 = sphi 0, %s443
          %p440 = scmp.ge.s32.totalorder %s439, 1
          %s444 = sphi %s433, %s433
          %s445 = sphi %s435, %s435
        $region233: #{tpu_custom_call.1} parent=229 // loop_header_branch
          %442 = sbr.rel (%p440) target = $region237
        $region234: #{tpu_custom_call.1} parent=229 // loop_body
          %v446 = vld [vmem:[%s444] sm:%s437]
          %447 = vst [vmem:[%s445] sm:%s437] %v446
        $region235: #{tpu_custom_call.1} parent=229 // loop_footer
          %s443 = sadd.s32 1, %s439
        $region236: #{tpu_custom_call.1} parent=229 // loop_footer_branch
          %438 = sbr.rel target = $region232
        $region237: #{tpu_custom_call.1} parent=229 // loop_exit
          _
      $region230: #{tpu_custom_call.1} parent=214 // pred_fallthru
        _
    $region215: #{tpu_custom_call.1} parent=1 // pred_fallthru
      _
    // Predicated region
    $region216: #{tpu_custom_call.1} parent=1 // pred_check
      %p411 = pneg %p407
    $region217: #{tpu_custom_call.1} parent=1 // pred_check_branch
      %413 = sbr.rel (%p411) target = $region219
    $region218: #{tpu_custom_call.1} parent=1 // pred_region
      %s414 = sshll.u32 1, 1
      %s415 = ssub.s32 %s414, 1
      loop: start=0, step=1, limit=1
      $region220: #{tpu_custom_call.1} parent=218 // loop_pre_header
        _
      $region221: #{tpu_custom_call.1} parent=218 // loop_header
        %s417 = sphi 0, %s421
        %p418 = scmp.ge.s32.totalorder %s417, 1
        %s422 = sphi %s403, %s403
        %s423 = sphi %s404, %s404
      $region222: #{tpu_custom_call.1} parent=218 // loop_header_branch
        %420 = sbr.rel (%p418) target = $region226
      $region223: #{tpu_custom_call.1} parent=218 // loop_body
        %v424 = vld [vmem:[%s422] sm:%s415]
        %425 = vst [vmem:[%s423] sm:%s415] %v424
      $region224: #{tpu_custom_call.1} parent=218 // loop_footer
        %s421 = sadd.s32 1, %s417
      $region225: #{tpu_custom_call.1} parent=218 // loop_footer_branch
        %416 = sbr.rel target = $region221
      $region226: #{tpu_custom_call.1} parent=218 // loop_exit
        _
    $region219: #{tpu_custom_call.1} parent=1 // pred_fallthru
      _
    // Predicated region
    $region238: #{tpu_custom_call.1} parent=1 // pred_check
      _
    $region239: #{tpu_custom_call.1} parent=1 // pred_check_branch
      %450 = sbr.rel (0) target = $region241
    $region240: #{tpu_custom_call.1} parent=1 // pred_region
      %451 = vsyncadd %s405, 16
    $region241: #{tpu_custom_call.1} parent=1 // pred_fallthru
      _
    %s452 = sadd.s32 %s14, 8
    %s453 = sld [smem:[#allocation5 + %s452]]
    %p454 = scmp.gt.s32.totalorder %s453, 0
    %s455 = scalar_select %p454, %s453, 0
    %p456 = scmp.lt.s32.totalorder %s455, 63
    %s457 = scalar_select %p456, %s455, 63
    %s458 = scalar_lea.vmem %s1, %s457
    %s459 = scalar_lea.vmem [#allocation2], 8
    %s460 = scalar_lea.sflag [#allocation3], 8
    %p462 = scmp.lt.u32.totalorder 1, 8
    %p463 = pneg %p462
    // Predicated region
    $region242: #{tpu_custom_call.1} parent=1 // pred_check
      _
    $region243: #{tpu_custom_call.1} parent=1 // pred_check_branch
      %465 = sbr.rel (%p462) target = $region245
    $region244: #{tpu_custom_call.1} parent=1 // pred_region
      %s481 = sand.u32 1, 7
      %p482 = scmp.eq.s32.totalorder %s481, 0
      %p483 = pneg %p482
      // Predicated region
      $region257: #{tpu_custom_call.1} parent=244 // pred_check
        _
      $region258: #{tpu_custom_call.1} parent=244 // pred_check_branch
        %485 = sbr.rel (%p482) target = $region260
      $region259: #{tpu_custom_call.1} parent=244 // pred_region
        %s486 = sand.u32 1, 7
        %s487 = ssub.s32 1, %s486
        %s488 = scalar_lea.vmem %s458, %s487
        %s489 = ssub.s32 1, %s486
        %s490 = scalar_lea.vmem %s459, %s489 [#allocation2]
        %s491 = sshll.u32 1, %s486
        %s492 = ssub.s32 %s491, 1
        loop: start=0, step=1, limit=1
        $region261: #{tpu_custom_call.1} parent=259 // loop_pre_header
          _
        $region262: #{tpu_custom_call.1} parent=259 // loop_header
          %s494 = sphi 0, %s498
          %p495 = scmp.ge.s32.totalorder %s494, 1
          %s499 = sphi %s488, %s488
          %s500 = sphi %s490, %s490
        $region263: #{tpu_custom_call.1} parent=259 // loop_header_branch
          %497 = sbr.rel (%p495) target = $region267
        $region264: #{tpu_custom_call.1} parent=259 // loop_body
          %v501 = vld [vmem:[%s499] sm:%s492]
          %502 = vst [vmem:[%s500] sm:%s492] %v501
        $region265: #{tpu_custom_call.1} parent=259 // loop_footer
          %s498 = sadd.s32 1, %s494
        $region266: #{tpu_custom_call.1} parent=259 // loop_footer_branch
          %493 = sbr.rel target = $region262
        $region267: #{tpu_custom_call.1} parent=259 // loop_exit
          _
      $region260: #{tpu_custom_call.1} parent=244 // pred_fallthru
        _
    $region245: #{tpu_custom_call.1} parent=1 // pred_fallthru
      _
    // Predicated region
    $region246: #{tpu_custom_call.1} parent=1 // pred_check
      %p466 = pneg %p462
    $region247: #{tpu_custom_call.1} parent=1 // pred_check_branch
      %468 = sbr.rel (%p466) target = $region249
    $region248: #{tpu_custom_call.1} parent=1 // pred_region
      %s469 = sshll.u32 1, 1
      %s470 = ssub.s32 %s469, 1
      loop: start=0, step=1, limit=1
      $region250: #{tpu_custom_call.1} parent=248 // loop_pre_header
        _
      $region251: #{tpu_custom_call.1} parent=248 // loop_header
        %s472 = sphi 0, %s476
        %p473 = scmp.ge.s32.totalorder %s472, 1
        %s477 = sphi %s458, %s458
        %s478 = sphi %s459, %s459
      $region252: #{tpu_custom_call.1} parent=248 // loop_header_branch
        %475 = sbr.rel (%p473) target = $region256
      $region253: #{tpu_custom_call.1} parent=248 // loop_body
        %v479 = vld [vmem:[%s477] sm:%s470]
        %480 = vst [vmem:[%s478] sm:%s470] %v479
      $region254: #{tpu_custom_call.1} parent=248 // loop_footer
        %s476 = sadd.s32 1, %s472
      $region255: #{tpu_custom_call.1} parent=248 // loop_footer_branch
        %471 = sbr.rel target = $region251
      $region256: #{tpu_custom_call.1} parent=248 // loop_exit
        _
    $region249: #{tpu_custom_call.1} parent=1 // pred_fallthru
      _
    // Predicated region
    $region268: #{tpu_custom_call.1} parent=1 // pred_check
      _
    $region269: #{tpu_custom_call.1} parent=1 // pred_check_branch
      %505 = sbr.rel (0) target = $region271
    $region270: #{tpu_custom_call.1} parent=1 // pred_region
      %506 = vsyncadd %s460, 16
    $region271: #{tpu_custom_call.1} parent=1 // pred_fallthru
      _
    %s507 = sadd.s32 %s14, 9
    %s508 = sld [smem:[#allocation5 + %s507]]
    %p509 = scmp.gt.s32.totalorder %s508, 0
    %s510 = scalar_select %p509, %s508, 0
    %p511 = scmp.lt.s32.totalorder %s510, 63
    %s512 = scalar_select %p511, %s510, 63
    %s513 = scalar_lea.vmem %s1, %s512
    %s514 = scalar_lea.vmem [#allocation2], 9
    %s515 = scalar_lea.sflag [#allocation3], 9
    %p517 = scmp.lt.u32.totalorder 1, 8
    %p518 = pneg %p517
    // Predicated region
    $region272: #{tpu_custom_call.1} parent=1 // pred_check
      _
    $region273: #{tpu_custom_call.1} parent=1 // pred_check_branch
      %520 = sbr.rel (%p517) target = $region275
    $region274: #{tpu_custom_call.1} parent=1 // pred_region
      %s536 = sand.u32 1, 7
      %p537 = scmp.eq.s32.totalorder %s536, 0
      %p538 = pneg %p537
      // Predicated region
      $region287: #{tpu_custom_call.1} parent=274 // pred_check
        _
      $region288: #{tpu_custom_call.1} parent=274 // pred_check_branch
        %540 = sbr.rel (%p537) target = $region290
      $region289: #{tpu_custom_call.1} parent=274 // pred_region
        %s541 = sand.u32 1, 7
        %s542 = ssub.s32 1, %s541
        %s543 = scalar_lea.vmem %s513, %s542
        %s544 = ssub.s32 1, %s541
        %s545 = scalar_lea.vmem %s514, %s544 [#allocation2]
        %s546 = sshll.u32 1, %s541
        %s547 = ssub.s32 %s546, 1
        loop: start=0, step=1, limit=1
        $region291: #{tpu_custom_call.1} parent=289 // loop_pre_header
          _
        $region292: #{tpu_custom_call.1} parent=289 // loop_header
          %s549 = sphi 0, %s553
          %p550 = scmp.ge.s32.totalorder %s549, 1
          %s554 = sphi %s543, %s543
          %s555 = sphi %s545, %s545
        $region293: #{tpu_custom_call.1} parent=289 // loop_header_branch
          %552 = sbr.rel (%p550) target = $region297
        $region294: #{tpu_custom_call.1} parent=289 // loop_body
          %v556 = vld [vmem:[%s554] sm:%s547]
          %557 = vst [vmem:[%s555] sm:%s547] %v556
        $region295: #{tpu_custom_call.1} parent=289 // loop_footer
          %s553 = sadd.s32 1, %s549
        $region296: #{tpu_custom_call.1} parent=289 // loop_footer_branch
          %548 = sbr.rel target = $region292
        $region297: #{tpu_custom_call.1} parent=289 // loop_exit
          _
      $region290: #{tpu_custom_call.1} parent=274 // pred_fallthru
        _
    $region275: #{tpu_custom_call.1} parent=1 // pred_fallthru
      _
    // Predicated region
    $region276: #{tpu_custom_call.1} parent=1 // pred_check
      %p521 = pneg %p517
    $region277: #{tpu_custom_call.1} parent=1 // pred_check_branch
      %523 = sbr.rel (%p521) target = $region279
    $region278: #{tpu_custom_call.1} parent=1 // pred_region
      %s524 = sshll.u32 1, 1
      %s525 = ssub.s32 %s524, 1
      loop: start=0, step=1, limit=1
      $region280: #{tpu_custom_call.1} parent=278 // loop_pre_header
        _
      $region281: #{tpu_custom_call.1} parent=278 // loop_header
        %s527 = sphi 0, %s531
        %p528 = scmp.ge.s32.totalorder %s527, 1
        %s532 = sphi %s513, %s513
        %s533 = sphi %s514, %s514
      $region282: #{tpu_custom_call.1} parent=278 // loop_header_branch
        %530 = sbr.rel (%p528) target = $region286
      $region283: #{tpu_custom_call.1} parent=278 // loop_body
        %v534 = vld [vmem:[%s532] sm:%s525]
        %535 = vst [vmem:[%s533] sm:%s525] %v534
      $region284: #{tpu_custom_call.1} parent=278 // loop_footer
        %s531 = sadd.s32 1, %s527
      $region285: #{tpu_custom_call.1} parent=278 // loop_footer_branch
        %526 = sbr.rel target = $region281
      $region286: #{tpu_custom_call.1} parent=278 // loop_exit
        _
    $region279: #{tpu_custom_call.1} parent=1 // pred_fallthru
      _
    // Predicated region
    $region298: #{tpu_custom_call.1} parent=1 // pred_check
      _
    $region299: #{tpu_custom_call.1} parent=1 // pred_check_branch
      %560 = sbr.rel (0) target = $region301
    $region300: #{tpu_custom_call.1} parent=1 // pred_region
      %561 = vsyncadd %s515, 16
    $region301: #{tpu_custom_call.1} parent=1 // pred_fallthru
      _
    %s562 = sadd.s32 %s14, 10
    %s563 = sld [smem:[#allocation5 + %s562]]
    %p564 = scmp.gt.s32.totalorder %s563, 0
    %s565 = scalar_select %p564, %s563, 0
    %p566 = scmp.lt.s32.totalorder %s565, 63
    %s567 = scalar_select %p566, %s565, 63
    %s568 = scalar_lea.vmem %s1, %s567
    %s569 = scalar_lea.vmem [#allocation2], 10
    %s570 = scalar_lea.sflag [#allocation3], 10
    %p572 = scmp.lt.u32.totalorder 1, 8
    %p573 = pneg %p572
    // Predicated region
    $region302: #{tpu_custom_call.1} parent=1 // pred_check
      _
    $region303: #{tpu_custom_call.1} parent=1 // pred_check_branch
      %575 = sbr.rel (%p572) target = $region305
    $region304: #{tpu_custom_call.1} parent=1 // pred_region
      %s591 = sand.u32 1, 7
      %p592 = scmp.eq.s32.totalorder %s591, 0
      %p593 = pneg %p592
      // Predicated region
      $region317: #{tpu_custom_call.1} parent=304 // pred_check
        _
      $region318: #{tpu_custom_call.1} parent=304 // pred_check_branch
        %595 = sbr.rel (%p592) target = $region320
      $region319: #{tpu_custom_call.1} parent=304 // pred_region
        %s596 = sand.u32 1, 7
        %s597 = ssub.s32 1, %s596
        %s598 = scalar_lea.vmem %s568, %s597
        %s599 = ssub.s32 1, %s596
        %s600 = scalar_lea.vmem %s569, %s599 [#allocation2]
        %s601 = sshll.u32 1, %s596
        %s602 = ssub.s32 %s601, 1
        loop: start=0, step=1, limit=1
        $region321: #{tpu_custom_call.1} parent=319 // loop_pre_header
          _
        $region322: #{tpu_custom_call.1} parent=319 // loop_header
          %s604 = sphi 0, %s608
          %p605 = scmp.ge.s32.totalorder %s604, 1
          %s609 = sphi %s598, %s598
          %s610 = sphi %s600, %s600
        $region323: #{tpu_custom_call.1} parent=319 // loop_header_branch
          %607 = sbr.rel (%p605) target = $region327
        $region324: #{tpu_custom_call.1} parent=319 // loop_body
          %v611 = vld [vmem:[%s609] sm:%s602]
          %612 = vst [vmem:[%s610] sm:%s602] %v611
        $region325: #{tpu_custom_call.1} parent=319 // loop_footer
          %s608 = sadd.s32 1, %s604
        $region326: #{tpu_custom_call.1} parent=319 // loop_footer_branch
          %603 = sbr.rel target = $region322
        $region327: #{tpu_custom_call.1} parent=319 // loop_exit
          _
      $region320: #{tpu_custom_call.1} parent=304 // pred_fallthru
        _
    $region305: #{tpu_custom_call.1} parent=1 // pred_fallthru
      _
    // Predicated region
    $region306: #{tpu_custom_call.1} parent=1 // pred_check
      %p576 = pneg %p572
    $region307: #{tpu_custom_call.1} parent=1 // pred_check_branch
      %578 = sbr.rel (%p576) target = $region309
    $region308: #{tpu_custom_call.1} parent=1 // pred_region
      %s579 = sshll.u32 1, 1
      %s580 = ssub.s32 %s579, 1
      loop: start=0, step=1, limit=1
      $region310: #{tpu_custom_call.1} parent=308 // loop_pre_header
        _
      $region311: #{tpu_custom_call.1} parent=308 // loop_header
        %s582 = sphi 0, %s586
        %p583 = scmp.ge.s32.totalorder %s582, 1
        %s587 = sphi %s568, %s568
        %s588 = sphi %s569, %s569
      $region312: #{tpu_custom_call.1} parent=308 // loop_header_branch
        %585 = sbr.rel (%p583) target = $region316
      $region313: #{tpu_custom_call.1} parent=308 // loop_body
        %v589 = vld [vmem:[%s587] sm:%s580]
        %590 = vst [vmem:[%s588] sm:%s580] %v589
      $region314: #{tpu_custom_call.1} parent=308 // loop_footer
        %s586 = sadd.s32 1, %s582
      $region315: #{tpu_custom_call.1} parent=308 // loop_footer_branch
        %581 = sbr.rel target = $region311
      $region316: #{tpu_custom_call.1} parent=308 // loop_exit
        _
    $region309: #{tpu_custom_call.1} parent=1 // pred_fallthru
      _
    // Predicated region
    $region328: #{tpu_custom_call.1} parent=1 // pred_check
      _
    $region329: #{tpu_custom_call.1} parent=1 // pred_check_branch
      %615 = sbr.rel (0) target = $region331
    $region330: #{tpu_custom_call.1} parent=1 // pred_region
      %616 = vsyncadd %s570, 16
    $region331: #{tpu_custom_call.1} parent=1 // pred_fallthru
      _
    %s617 = sadd.s32 %s14, 11
    %s618 = sld [smem:[#allocation5 + %s617]]
    %p619 = scmp.gt.s32.totalorder %s618, 0
    %s620 = scalar_select %p619, %s618, 0
    %p621 = scmp.lt.s32.totalorder %s620, 63
    %s622 = scalar_select %p621, %s620, 63
    %s623 = scalar_lea.vmem %s1, %s622
    %s624 = scalar_lea.vmem [#allocation2], 11
    %s625 = scalar_lea.sflag [#allocation3], 11
    %p627 = scmp.lt.u32.totalorder 1, 8
    %p628 = pneg %p627
    // Predicated region
    $region332: #{tpu_custom_call.1} parent=1 // pred_check
      _
    $region333: #{tpu_custom_call.1} parent=1 // pred_check_branch
      %630 = sbr.rel (%p627) target = $region335
    $region334: #{tpu_custom_call.1} parent=1 // pred_region
      %s646 = sand.u32 1, 7
      %p647 = scmp.eq.s32.totalorder %s646, 0
      %p648 = pneg %p647
      // Predicated region
      $region347: #{tpu_custom_call.1} parent=334 // pred_check
        _
      $region348: #{tpu_custom_call.1} parent=334 // pred_check_branch
        %650 = sbr.rel (%p647) target = $region350
      $region349: #{tpu_custom_call.1} parent=334 // pred_region
        %s651 = sand.u32 1, 7
        %s652 = ssub.s32 1, %s651
        %s653 = scalar_lea.vmem %s623, %s652
        %s654 = ssub.s32 1, %s651
        %s655 = scalar_lea.vmem %s624, %s654 [#allocation2]
        %s656 = sshll.u32 1, %s651
        %s657 = ssub.s32 %s656, 1
        loop: start=0, step=1, limit=1
        $region351: #{tpu_custom_call.1} parent=349 // loop_pre_header
          _
        $region352: #{tpu_custom_call.1} parent=349 // loop_header
          %s659 = sphi 0, %s663
          %p660 = scmp.ge.s32.totalorder %s659, 1
          %s664 = sphi %s653, %s653
          %s665 = sphi %s655, %s655
        $region353: #{tpu_custom_call.1} parent=349 // loop_header_branch
          %662 = sbr.rel (%p660) target = $region357
        $region354: #{tpu_custom_call.1} parent=349 // loop_body
          %v666 = vld [vmem:[%s664] sm:%s657]
          %667 = vst [vmem:[%s665] sm:%s657] %v666
        $region355: #{tpu_custom_call.1} parent=349 // loop_footer
          %s663 = sadd.s32 1, %s659
        $region356: #{tpu_custom_call.1} parent=349 // loop_footer_branch
          %658 = sbr.rel target = $region352
        $region357: #{tpu_custom_call.1} parent=349 // loop_exit
          _
      $region350: #{tpu_custom_call.1} parent=334 // pred_fallthru
        _
    $region335: #{tpu_custom_call.1} parent=1 // pred_fallthru
      _
    // Predicated region
    $region336: #{tpu_custom_call.1} parent=1 // pred_check
      %p631 = pneg %p627
    $region337: #{tpu_custom_call.1} parent=1 // pred_check_branch
      %633 = sbr.rel (%p631) target = $region339
    $region338: #{tpu_custom_call.1} parent=1 // pred_region
      %s634 = sshll.u32 1, 1
      %s635 = ssub.s32 %s634, 1
      loop: start=0, step=1, limit=1
      $region340: #{tpu_custom_call.1} parent=338 // loop_pre_header
        _
      $region341: #{tpu_custom_call.1} parent=338 // loop_header
        %s637 = sphi 0, %s641
        %p638 = scmp.ge.s32.totalorder %s637, 1
        %s642 = sphi %s623, %s623
        %s643 = sphi %s624, %s624
      $region342: #{tpu_custom_call.1} parent=338 // loop_header_branch
        %640 = sbr.rel (%p638) target = $region346
      $region343: #{tpu_custom_call.1} parent=338 // loop_body
        %v644 = vld [vmem:[%s642] sm:%s635]
        %645 = vst [vmem:[%s643] sm:%s635] %v644
      $region344: #{tpu_custom_call.1} parent=338 // loop_footer
        %s641 = sadd.s32 1, %s637
      $region345: #{tpu_custom_call.1} parent=338 // loop_footer_branch
        %636 = sbr.rel target = $region341
      $region346: #{tpu_custom_call.1} parent=338 // loop_exit
        _
    $region339: #{tpu_custom_call.1} parent=1 // pred_fallthru
      _
    // Predicated region
    $region358: #{tpu_custom_call.1} parent=1 // pred_check
      _
    $region359: #{tpu_custom_call.1} parent=1 // pred_check_branch
      %670 = sbr.rel (0) target = $region361
    $region360: #{tpu_custom_call.1} parent=1 // pred_region
      %671 = vsyncadd %s625, 16
    $region361: #{tpu_custom_call.1} parent=1 // pred_fallthru
      _
    %s672 = sadd.s32 %s14, 12
    %s673 = sld [smem:[#allocation5 + %s672]]
    %p674 = scmp.gt.s32.totalorder %s673, 0
    %s675 = scalar_select %p674, %s673, 0
    %p676 = scmp.lt.s32.totalorder %s675, 63
    %s677 = scalar_select %p676, %s675, 63
    %s678 = scalar_lea.vmem %s1, %s677
    %s679 = scalar_lea.vmem [#allocation2], 12
    %s680 = scalar_lea.sflag [#allocation3], 12
    %p682 = scmp.lt.u32.totalorder 1, 8
    %p683 = pneg %p682
    // Predicated region
    $region362: #{tpu_custom_call.1} parent=1 // pred_check
      _
    $region363: #{tpu_custom_call.1} parent=1 // pred_check_branch
      %685 = sbr.rel (%p682) target = $region365
    $region364: #{tpu_custom_call.1} parent=1 // pred_region
      %s701 = sand.u32 1, 7
      %p702 = scmp.eq.s32.totalorder %s701, 0
      %p703 = pneg %p702
      // Predicated region
      $region377: #{tpu_custom_call.1} parent=364 // pred_check
        _
      $region378: #{tpu_custom_call.1} parent=364 // pred_check_branch
        %705 = sbr.rel (%p702) target = $region380
      $region379: #{tpu_custom_call.1} parent=364 // pred_region
        %s706 = sand.u32 1, 7
        %s707 = ssub.s32 1, %s706
        %s708 = scalar_lea.vmem %s678, %s707
        %s709 = ssub.s32 1, %s706
        %s710 = scalar_lea.vmem %s679, %s709 [#allocation2]
        %s711 = sshll.u32 1, %s706
        %s712 = ssub.s32 %s711, 1
        loop: start=0, step=1, limit=1
        $region381: #{tpu_custom_call.1} parent=379 // loop_pre_header
          _
        $region382: #{tpu_custom_call.1} parent=379 // loop_header
          %s714 = sphi 0, %s718
          %p715 = scmp.ge.s32.totalorder %s714, 1
          %s719 = sphi %s708, %s708
          %s720 = sphi %s710, %s710
        $region383: #{tpu_custom_call.1} parent=379 // loop_header_branch
          %717 = sbr.rel (%p715) target = $region387
        $region384: #{tpu_custom_call.1} parent=379 // loop_body
          %v721 = vld [vmem:[%s719] sm:%s712]
          %722 = vst [vmem:[%s720] sm:%s712] %v721
        $region385: #{tpu_custom_call.1} parent=379 // loop_footer
          %s718 = sadd.s32 1, %s714
        $region386: #{tpu_custom_call.1} parent=379 // loop_footer_branch
          %713 = sbr.rel target = $region382
        $region387: #{tpu_custom_call.1} parent=379 // loop_exit
          _
      $region380: #{tpu_custom_call.1} parent=364 // pred_fallthru
        _
    $region365: #{tpu_custom_call.1} parent=1 // pred_fallthru
      _
    // Predicated region
    $region366: #{tpu_custom_call.1} parent=1 // pred_check
      %p686 = pneg %p682
    $region367: #{tpu_custom_call.1} parent=1 // pred_check_branch
      %688 = sbr.rel (%p686) target = $region369
    $region368: #{tpu_custom_call.1} parent=1 // pred_region
      %s689 = sshll.u32 1, 1
      %s690 = ssub.s32 %s689, 1
      loop: start=0, step=1, limit=1
      $region370: #{tpu_custom_call.1} parent=368 // loop_pre_header
        _
      $region371: #{tpu_custom_call.1} parent=368 // loop_header
        %s692 = sphi 0, %s696
        %p693 = scmp.ge.s32.totalorder %s692, 1
        %s697 = sphi %s678, %s678
        %s698 = sphi %s679, %s679
      $region372: #{tpu_custom_call.1} parent=368 // loop_header_branch
        %695 = sbr.rel (%p693) target = $region376
      $region373: #{tpu_custom_call.1} parent=368 // loop_body
        %v699 = vld [vmem:[%s697] sm:%s690]
        %700 = vst [vmem:[%s698] sm:%s690] %v699
      $region374: #{tpu_custom_call.1} parent=368 // loop_footer
        %s696 = sadd.s32 1, %s692
      $region375: #{tpu_custom_call.1} parent=368 // loop_footer_branch
        %691 = sbr.rel target = $region371
      $region376: #{tpu_custom_call.1} parent=368 // loop_exit
        _
    $region369: #{tpu_custom_call.1} parent=1 // pred_fallthru
      _
    // Predicated region
    $region388: #{tpu_custom_call.1} parent=1 // pred_check
      _
    $region389: #{tpu_custom_call.1} parent=1 // pred_check_branch
      %725 = sbr.rel (0) target = $region391
    $region390: #{tpu_custom_call.1} parent=1 // pred_region
      %726 = vsyncadd %s680, 16
    $region391: #{tpu_custom_call.1} parent=1 // pred_fallthru
      _
    %s727 = sadd.s32 %s14, 13
    %s728 = sld [smem:[#allocation5 + %s727]]
    %p729 = scmp.gt.s32.totalorder %s728, 0
    %s730 = scalar_select %p729, %s728, 0
    %p731 = scmp.lt.s32.totalorder %s730, 63
    %s732 = scalar_select %p731, %s730, 63
    %s733 = scalar_lea.vmem %s1, %s732
    %s734 = scalar_lea.vmem [#allocation2], 13
    %s735 = scalar_lea.sflag [#allocation3], 13
    %p737 = scmp.lt.u32.totalorder 1, 8
    %p738 = pneg %p737
    // Predicated region
    $region392: #{tpu_custom_call.1} parent=1 // pred_check
      _
    $region393: #{tpu_custom_call.1} parent=1 // pred_check_branch
      %740 = sbr.rel (%p737) target = $region395
    $region394: #{tpu_custom_call.1} parent=1 // pred_region
      %s756 = sand.u32 1, 7
      %p757 = scmp.eq.s32.totalorder %s756, 0
      %p758 = pneg %p757
      // Predicated region
      $region407: #{tpu_custom_call.1} parent=394 // pred_check
        _
      $region408: #{tpu_custom_call.1} parent=394 // pred_check_branch
        %760 = sbr.rel (%p757) target = $region410
      $region409: #{tpu_custom_call.1} parent=394 // pred_region
        %s761 = sand.u32 1, 7
        %s762 = ssub.s32 1, %s761
        %s763 = scalar_lea.vmem %s733, %s762
        %s764 = ssub.s32 1, %s761
        %s765 = scalar_lea.vmem %s734, %s764 [#allocation2]
        %s766 = sshll.u32 1, %s761
        %s767 = ssub.s32 %s766, 1
        loop: start=0, step=1, limit=1
        $region411: #{tpu_custom_call.1} parent=409 // loop_pre_header
          _
        $region412: #{tpu_custom_call.1} parent=409 // loop_header
          %s769 = sphi 0, %s773
          %p770 = scmp.ge.s32.totalorder %s769, 1
          %s774 = sphi %s763, %s763
          %s775 = sphi %s765, %s765
        $region413: #{tpu_custom_call.1} parent=409 // loop_header_branch
          %772 = sbr.rel (%p770) target = $region417
        $region414: #{tpu_custom_call.1} parent=409 // loop_body
          %v776 = vld [vmem:[%s774] sm:%s767]
          %777 = vst [vmem:[%s775] sm:%s767] %v776
        $region415: #{tpu_custom_call.1} parent=409 // loop_footer
          %s773 = sadd.s32 1, %s769
        $region416: #{tpu_custom_call.1} parent=409 // loop_footer_branch
          %768 = sbr.rel target = $region412
        $region417: #{tpu_custom_call.1} parent=409 // loop_exit
          _
      $region410: #{tpu_custom_call.1} parent=394 // pred_fallthru
        _
    $region395: #{tpu_custom_call.1} parent=1 // pred_fallthru
      _
    // Predicated region
    $region396: #{tpu_custom_call.1} parent=1 // pred_check
      %p741 = pneg %p737
    $region397: #{tpu_custom_call.1} parent=1 // pred_check_branch
      %743 = sbr.rel (%p741) target = $region399
    $region398: #{tpu_custom_call.1} parent=1 // pred_region
      %s744 = sshll.u32 1, 1
      %s745 = ssub.s32 %s744, 1
      loop: start=0, step=1, limit=1
      $region400: #{tpu_custom_call.1} parent=398 // loop_pre_header
        _
      $region401: #{tpu_custom_call.1} parent=398 // loop_header
        %s747 = sphi 0, %s751
        %p748 = scmp.ge.s32.totalorder %s747, 1
        %s752 = sphi %s733, %s733
        %s753 = sphi %s734, %s734
      $region402: #{tpu_custom_call.1} parent=398 // loop_header_branch
        %750 = sbr.rel (%p748) target = $region406
      $region403: #{tpu_custom_call.1} parent=398 // loop_body
        %v754 = vld [vmem:[%s752] sm:%s745]
        %755 = vst [vmem:[%s753] sm:%s745] %v754
      $region404: #{tpu_custom_call.1} parent=398 // loop_footer
        %s751 = sadd.s32 1, %s747
      $region405: #{tpu_custom_call.1} parent=398 // loop_footer_branch
        %746 = sbr.rel target = $region401
      $region406: #{tpu_custom_call.1} parent=398 // loop_exit
        _
    $region399: #{tpu_custom_call.1} parent=1 // pred_fallthru
      _
    // Predicated region
    $region418: #{tpu_custom_call.1} parent=1 // pred_check
      _
    $region419: #{tpu_custom_call.1} parent=1 // pred_check_branch
      %780 = sbr.rel (0) target = $region421
    $region420: #{tpu_custom_call.1} parent=1 // pred_region
      %781 = vsyncadd %s735, 16
    $region421: #{tpu_custom_call.1} parent=1 // pred_fallthru
      _
    %s782 = sadd.s32 %s14, 14
    %s783 = sld [smem:[#allocation5 + %s782]]
    %p784 = scmp.gt.s32.totalorder %s783, 0
    %s785 = scalar_select %p784, %s783, 0
    %p786 = scmp.lt.s32.totalorder %s785, 63
    %s787 = scalar_select %p786, %s785, 63
    %s788 = scalar_lea.vmem %s1, %s787
    %s789 = scalar_lea.vmem [#allocation2], 14
    %s790 = scalar_lea.sflag [#allocation3], 14
    %p792 = scmp.lt.u32.totalorder 1, 8
    %p793 = pneg %p792
    // Predicated region
    $region422: #{tpu_custom_call.1} parent=1 // pred_check
      _
    $region423: #{tpu_custom_call.1} parent=1 // pred_check_branch
      %795 = sbr.rel (%p792) target = $region425
    $region424: #{tpu_custom_call.1} parent=1 // pred_region
      %s811 = sand.u32 1, 7
      %p812 = scmp.eq.s32.totalorder %s811, 0
      %p813 = pneg %p812
      // Predicated region
      $region437: #{tpu_custom_call.1} parent=424 // pred_check
        _
      $region438: #{tpu_custom_call.1} parent=424 // pred_check_branch
        %815 = sbr.rel (%p812) target = $region440
      $region439: #{tpu_custom_call.1} parent=424 // pred_region
        %s816 = sand.u32 1, 7
        %s817 = ssub.s32 1, %s816
        %s818 = scalar_lea.vmem %s788, %s817
        %s819 = ssub.s32 1, %s816
        %s820 = scalar_lea.vmem %s789, %s819 [#allocation2]
        %s821 = sshll.u32 1, %s816
        %s822 = ssub.s32 %s821, 1
        loop: start=0, step=1, limit=1
        $region441: #{tpu_custom_call.1} parent=439 // loop_pre_header
          _
        $region442: #{tpu_custom_call.1} parent=439 // loop_header
          %s824 = sphi 0, %s828
          %p825 = scmp.ge.s32.totalorder %s824, 1
          %s829 = sphi %s818, %s818
          %s830 = sphi %s820, %s820
        $region443: #{tpu_custom_call.1} parent=439 // loop_header_branch
          %827 = sbr.rel (%p825) target = $region447
        $region444: #{tpu_custom_call.1} parent=439 // loop_body
          %v831 = vld [vmem:[%s829] sm:%s822]
          %832 = vst [vmem:[%s830] sm:%s822] %v831
        $region445: #{tpu_custom_call.1} parent=439 // loop_footer
          %s828 = sadd.s32 1, %s824
        $region446: #{tpu_custom_call.1} parent=439 // loop_footer_branch
          %823 = sbr.rel target = $region442
        $region447: #{tpu_custom_call.1} parent=439 // loop_exit
          _
      $region440: #{tpu_custom_call.1} parent=424 // pred_fallthru
        _
    $region425: #{tpu_custom_call.1} parent=1 // pred_fallthru
      _
    // Predicated region
    $region426: #{tpu_custom_call.1} parent=1 // pred_check
      %p796 = pneg %p792
    $region427: #{tpu_custom_call.1} parent=1 // pred_check_branch
      %798 = sbr.rel (%p796) target = $region429
    $region428: #{tpu_custom_call.1} parent=1 // pred_region
      %s799 = sshll.u32 1, 1
      %s800 = ssub.s32 %s799, 1
      loop: start=0, step=1, limit=1
      $region430: #{tpu_custom_call.1} parent=428 // loop_pre_header
        _
      $region431: #{tpu_custom_call.1} parent=428 // loop_header
        %s802 = sphi 0, %s806
        %p803 = scmp.ge.s32.totalorder %s802, 1
        %s807 = sphi %s788, %s788
        %s808 = sphi %s789, %s789
      $region432: #{tpu_custom_call.1} parent=428 // loop_header_branch
        %805 = sbr.rel (%p803) target = $region436
      $region433: #{tpu_custom_call.1} parent=428 // loop_body
        %v809 = vld [vmem:[%s807] sm:%s800]
        %810 = vst [vmem:[%s808] sm:%s800] %v809
      $region434: #{tpu_custom_call.1} parent=428 // loop_footer
        %s806 = sadd.s32 1, %s802
      $region435: #{tpu_custom_call.1} parent=428 // loop_footer_branch
        %801 = sbr.rel target = $region431
      $region436: #{tpu_custom_call.1} parent=428 // loop_exit
        _
    $region429: #{tpu_custom_call.1} parent=1 // pred_fallthru
      _
    // Predicated region
    $region448: #{tpu_custom_call.1} parent=1 // pred_check
      _
    $region449: #{tpu_custom_call.1} parent=1 // pred_check_branch
      %835 = sbr.rel (0) target = $region451
    $region450: #{tpu_custom_call.1} parent=1 // pred_region
      %836 = vsyncadd %s790, 16
    $region451: #{tpu_custom_call.1} parent=1 // pred_fallthru
      _
    %s837 = sadd.s32 %s14, 15
    %s838 = sld [smem:[#allocation5 + %s837]]
    %p839 = scmp.gt.s32.totalorder %s838, 0
    %s840 = scalar_select %p839, %s838, 0
    %p841 = scmp.lt.s32.totalorder %s840, 63
    %s842 = scalar_select %p841, %s840, 63
    %s843 = scalar_lea.vmem %s1, %s842
    %s844 = scalar_lea.vmem [#allocation2], 15
    %s845 = scalar_lea.sflag [#allocation3], 15
    %p847 = scmp.lt.u32.totalorder 1, 8
    %p848 = pneg %p847
    // Predicated region
    $region452: #{tpu_custom_call.1} parent=1 // pred_check
      _
    $region453: #{tpu_custom_call.1} parent=1 // pred_check_branch
      %850 = sbr.rel (%p847) target = $region455
    $region454: #{tpu_custom_call.1} parent=1 // pred_region
      %s866 = sand.u32 1, 7
      %p867 = scmp.eq.s32.totalorder %s866, 0
      %p868 = pneg %p867
      // Predicated region
      $region467: #{tpu_custom_call.1} parent=454 // pred_check
        _
      $region468: #{tpu_custom_call.1} parent=454 // pred_check_branch
        %870 = sbr.rel (%p867) target = $region470
      $region469: #{tpu_custom_call.1} parent=454 // pred_region
        %s871 = sand.u32 1, 7
        %s872 = ssub.s32 1, %s871
        %s873 = scalar_lea.vmem %s843, %s872
        %s874 = ssub.s32 1, %s871
        %s875 = scalar_lea.vmem %s844, %s874 [#allocation2]
        %s876 = sshll.u32 1, %s871
        %s877 = ssub.s32 %s876, 1
        loop: start=0, step=1, limit=1
        $region471: #{tpu_custom_call.1} parent=469 // loop_pre_header
          _
        $region472: #{tpu_custom_call.1} parent=469 // loop_header
          %s879 = sphi 0, %s883
          %p880 = scmp.ge.s32.totalorder %s879, 1
          %s884 = sphi %s873, %s873
          %s885 = sphi %s875, %s875
        $region473: #{tpu_custom_call.1} parent=469 // loop_header_branch
          %882 = sbr.rel (%p880) target = $region477
        $region474: #{tpu_custom_call.1} parent=469 // loop_body
          %v886 = vld [vmem:[%s884] sm:%s877]
          %887 = vst [vmem:[%s885] sm:%s877] %v886
        $region475: #{tpu_custom_call.1} parent=469 // loop_footer
          %s883 = sadd.s32 1, %s879
        $region476: #{tpu_custom_call.1} parent=469 // loop_footer_branch
          %878 = sbr.rel target = $region472
        $region477: #{tpu_custom_call.1} parent=469 // loop_exit
          _
      $region470: #{tpu_custom_call.1} parent=454 // pred_fallthru
        _
    $region455: #{tpu_custom_call.1} parent=1 // pred_fallthru
      _
    // Predicated region
    $region456: #{tpu_custom_call.1} parent=1 // pred_check
      %p851 = pneg %p847
    $region457: #{tpu_custom_call.1} parent=1 // pred_check_branch
      %853 = sbr.rel (%p851) target = $region459
    $region458: #{tpu_custom_call.1} parent=1 // pred_region
      %s854 = sshll.u32 1, 1
      %s855 = ssub.s32 %s854, 1
      loop: start=0, step=1, limit=1
      $region460: #{tpu_custom_call.1} parent=458 // loop_pre_header
        _
      $region461: #{tpu_custom_call.1} parent=458 // loop_header
        %s857 = sphi 0, %s861
        %p858 = scmp.ge.s32.totalorder %s857, 1
        %s862 = sphi %s843, %s843
        %s863 = sphi %s844, %s844
      $region462: #{tpu_custom_call.1} parent=458 // loop_header_branch
        %860 = sbr.rel (%p858) target = $region466
      $region463: #{tpu_custom_call.1} parent=458 // loop_body
        %v864 = vld [vmem:[%s862] sm:%s855]
        %865 = vst [vmem:[%s863] sm:%s855] %v864
      $region464: #{tpu_custom_call.1} parent=458 // loop_footer
        %s861 = sadd.s32 1, %s857
      $region465: #{tpu_custom_call.1} parent=458 // loop_footer_branch
        %856 = sbr.rel target = $region461
      $region466: #{tpu_custom_call.1} parent=458 // loop_exit
        _
    $region459: #{tpu_custom_call.1} parent=1 // pred_fallthru
      _
    // Predicated region
    $region478: #{tpu_custom_call.1} parent=1 // pred_check
      _
    $region479: #{tpu_custom_call.1} parent=1 // pred_check_branch
      %890 = sbr.rel (0) target = $region481
    $region480: #{tpu_custom_call.1} parent=1 // pred_region
      %891 = vsyncadd %s845, 16
    $region481: #{tpu_custom_call.1} parent=1 // pred_fallthru
      _
    %s892 = smul.u32 1, 1
    %s893 = sshll.u32 %s892, 4
    %894 = dma.done [#allocation3], %s893
    %s895 = sshll.u32 %s892, 4
    %896 = dma.done %s75, %s895
    %s897 = sshll.u32 %s892, 4
    %898 = dma.done %s130, %s897
    %s899 = sshll.u32 %s892, 4
    %900 = dma.done %s185, %s899
    %s901 = sshll.u32 %s892, 4
    %902 = dma.done %s240, %s901
    %s903 = sshll.u32 %s892, 4
    %904 = dma.done %s295, %s903
    %s905 = sshll.u32 %s892, 4
    %906 = dma.done %s350, %s905
    %s907 = sshll.u32 %s892, 4
    %908 = dma.done %s405, %s907
    %s909 = sshll.u32 %s892, 4
    %910 = dma.done %s460, %s909
    %s911 = sshll.u32 %s892, 4
    %912 = dma.done %s515, %s911
    %s913 = sshll.u32 %s892, 4
    %914 = dma.done %s570, %s913
    %s915 = sshll.u32 %s892, 4
    %916 = dma.done %s625, %s915
    %s917 = sshll.u32 %s892, 4
    %918 = dma.done %s680, %s917
    %s919 = sshll.u32 %s892, 4
    %920 = dma.done %s735, %s919
    %s921 = sshll.u32 %s892, 4
    %922 = dma.done %s790, %s921
    %s923 = sshll.u32 %s892, 4
    %924 = dma.done %s845, %s923
    %v925 = vld [vmem:[#allocation2] sm:$0xff]
    %v926 = vld [vmem:[#allocation2 + $0x8] sm:$0xff]
    %vm927 = vcmask 261120
    %928 = vst.msk [vmem:[#allocation6] sm:$0xff] %vm927, %v925
    %929 = vst.msk [vmem:[#allocation6 + $0x8] sm:$0xff] %vm927, %v926
    // Predicated region
    $region482: #{tpu_custom_call.1} parent=1 // pred_check
      _
    $region483: #{tpu_custom_call.1} parent=1 // pred_check_branch
      %931 = sbr.rel (0) target = $region485
    $region484: #{tpu_custom_call.1} parent=1 // pred_region
      %s933 = ssub.s32 256, 256
      %934 = vsyncadd [#allocation7], %s933
      %s935 = sshll.u32 [#allocation6], 4
      %s936 = int_to_ptr.vmem [resolvable:$true] %s935
      %941 = dma.vmem_to_hbm [thread:$0]  %s936, 256, %s2, [#allocation7], 128, 128, 8
    $region485: #{tpu_custom_call.1} parent=1 // pred_fallthru
      _
    // Predicated region
    $region486: #{tpu_custom_call.1} parent=1 // pred_check
      _
    $region487: #{tpu_custom_call.1} parent=1 // pred_check_branch
      %943 = sbr.rel (0) target = $region489
    $region488: #{tpu_custom_call.1} parent=1 // pred_region
      %944 = dma.done [#allocation7], 256
    $region489: #{tpu_custom_call.1} parent=1 // pred_fallthru
      _
    %945 = vsyncpa [#allocation7], 1
  %946 = vsyncmov [#allocation3]
  %s947 = vpop.sfrf %946
  %p948 = scmp.eq.s32.totalorder %s947, 0
  %p949 = pneg %p948
  %951 = shalt.err (%p949)
  %s952 = scalar_lea.sflag [#allocation3], 1
  %953 = vsyncmov %s952
  %s954 = vpop.sfrf %953
  %p955 = scmp.eq.s32.totalorder %s954, 0
  %p956 = pneg %p955
  %958 = shalt.err (%p956)
  %s959 = scalar_lea.sflag [#allocation3], 2
  %960 = vsyncmov %s959
  %s961 = vpop.sfrf %960
  %p962 = scmp.eq.s32.totalorder %s961, 0
  %p963 = pneg %p962
  %965 = shalt.err (%p963)
  %s966 = scalar_lea.sflag [#allocation3], 3
  %967 = vsyncmov %s966
  %s968 = vpop.sfrf %967
  %p969 = scmp.eq.s32.totalorder %s968, 0
  %p970 = pneg %p969
  %972 = shalt.err (%p970)
  %s973 = scalar_lea.sflag [#allocation3], 4
  %974 = vsyncmov %s973
  %s975 = vpop.sfrf %974
  %p976 = scmp.eq.s32.totalorder %s975, 0
  %p977 = pneg %p976
  %979 = shalt.err (%p977)
  %s980 = scalar_lea.sflag [#allocation3], 5
  %981 = vsyncmov %s980
  %s982 = vpop.sfrf %981
  %p983 = scmp.eq.s32.totalorder %s982, 0
  %p984 = pneg %p983
  %986 = shalt.err (%p984)
  %s987 = scalar_lea.sflag [#allocation3], 6
  %988 = vsyncmov %s987
  %s989 = vpop.sfrf %988
  %p990 = scmp.eq.s32.totalorder %s989, 0
  %p991 = pneg %p990
  %993 = shalt.err (%p991)
  %s994 = scalar_lea.sflag [#allocation3], 7
  %995 = vsyncmov %s994
  %s996 = vpop.sfrf %995
  %p997 = scmp.eq.s32.totalorder %s996, 0
  %p998 = pneg %p997
  %1000 = shalt.err (%p998)
  %s1001 = scalar_lea.sflag [#allocation3], 8
  %1002 = vsyncmov %s1001
  %s1003 = vpop.sfrf %1002
  %p1004 = scmp.eq.s32.totalorder %s1003, 0
  %p1005 = pneg %p1004
  %1007 = shalt.err (%p1005)
  %s1008 = scalar_lea.sflag [#allocation3], 9
  %1009 = vsyncmov %s1008
  %s1010 = vpop.sfrf %1009
  %p1011 = scmp.eq.s32.totalorder %s1010, 0
  %p1012 = pneg %p1011
  %1014 = shalt.err (%p1012)
  %s1015 = scalar_lea.sflag [#allocation3], 10
  %1016 = vsyncmov %s1015
  %s1017 = vpop.sfrf %1016
  %p1018 = scmp.eq.s32.totalorder %s1017, 0
  %p1019 = pneg %p1018
  %1021 = shalt.err (%p1019)
  %s1022 = scalar_lea.sflag [#allocation3], 11
  %1023 = vsyncmov %s1022
  %s1024 = vpop.sfrf %1023
  %p1025 = scmp.eq.s32.totalorder %s1024, 0
  %p1026 = pneg %p1025
  %1028 = shalt.err (%p1026)
  %s1029 = scalar_lea.sflag [#allocation3], 12
  %1030 = vsyncmov %s1029
  %s1031 = vpop.sfrf %1030
  %p1032 = scmp.eq.s32.totalorder %s1031, 0
  %p1033 = pneg %p1032
  %1035 = shalt.err (%p1033)
  %s1036 = scalar_lea.sflag [#allocation3], 13
  %1037 = vsyncmov %s1036
  %s1038 = vpop.sfrf %1037
  %p1039 = scmp.eq.s32.totalorder %s1038, 0
  %p1040 = pneg %p1039
  %1042 = shalt.err (%p1040)
  %s1043 = scalar_lea.sflag [#allocation3], 14
  %1044 = vsyncmov %s1043
  %s1045 = vpop.sfrf %1044
  %p1046 = scmp.eq.s32.totalorder %s1045, 0
  %p1047 = pneg %p1046
  %1049 = shalt.err (%p1047)
  %s1050 = scalar_lea.sflag [#allocation3], 15
  %1051 = vsyncmov %s1050
  %s1052 = vpop.sfrf %1051
  %p1053 = scmp.eq.s32.totalorder %s1052, 0
  %p1054 = pneg %p1053
  %1056 = shalt.err (%p1054)

</llo_original>
